<compile_context>
chip_gen: v7x
topology: tpu7x:2x2x1
jax: 0.10.0
libtpu: 0.0.40
codegen_flags: <defaults>
</compile_context>

<pallas_src>
import jax
import jax.numpy as jnp
from jax.experimental import pallas as pl
from jax.experimental.pallas import tpu as pltpu


# ---------------------------------------------------------------------------
# Pallas kernel: fused bidirectional LSTM recurrence.
#   xg_ref  : (S, 2, B, 4H)  precomputed input-side gate pre-activations
#             [:, 0] = fwd direction at time t, [:, 1] = bwd direction at time S-1-t
#   whh_ref : (2, H, 4H)     W_hh^T per direction
#   out_ref : (S, B, 2H)     time-major output, lanes [0:H]=fwd, [H:2H]=bwd
#   hn_ref  : (2, B, H)      final hidden state per direction
#   cn_ref  : (2, B, H)      final cell state per direction
#   h_scr/c_scr : VMEM scratch carrying the recurrence.
# ---------------------------------------------------------------------------
def _bilstm_kernel(xg_ref, whh_ref, out_ref, hn_ref, cn_ref, h_scr, c_scr):
    S = out_ref.shape[0]
    H = hn_ref.shape[-1]

    h_scr[...] = jnp.zeros_like(h_scr)
    c_scr[...] = jnp.zeros_like(c_scr)

    whh = whh_ref[...]  # (2, H, 4H), hoisted out of the loop

    def step(t, carry):
        x_g = xg_ref[t]                                   # (2, B, 4H)
        # recurrent projection: batched per-direction matmul (no wasted FLOPs)
        gates = x_g + jnp.einsum(
            'dbh,dhg->dbg', h_scr[...], whh,
            preferred_element_type=jnp.float32)           # (2, B, 4H)

        # Two transcendental passes over the full gate slab instead of four
        # per-chunk calls (PyTorch gate order: i, f, g, o).
        sg = jax.nn.sigmoid(gates)
        th = jnp.tanh(gates)
        i_g = sg[..., 0 * H:1 * H]
        f_g = sg[..., 1 * H:2 * H]
        g_g = th[..., 2 * H:3 * H]
        o_g = sg[..., 3 * H:4 * H]

        c_new = f_g * c_scr[...] + i_g * g_g              # (2, B, H)
        h_new = o_g * jnp.tanh(c_new)

        h_scr[...] = h_new
        c_scr[...] = c_new

        # fwd hidden belongs to time t, bwd hidden belongs to time S-1-t.
        out_ref[pl.ds(t, 1), :, 0:H] = h_new[0][None]
        out_ref[pl.ds(S - 1 - t, 1), :, H:2 * H] = h_new[1][None]
        return carry

    # S is small and static here -> fully unroll for LLO scheduler visibility.
    # (For long sequences, drop unroll or block time over a grid axis.)
    jax.lax.fori_loop(0, S, step, 0, unroll=True)

    hn_ref[...] = h_scr[...]
    cn_ref[...] = c_scr[...]


def _bilstm_pallas(xg, whh, seq_len, batch, hidden_size):
    S, B, H = seq_len, batch, hidden_size
    return pl.pallas_call(
        _bilstm_kernel,
        out_shape=(
            jax.ShapeDtypeStruct((S, B, 2 * H), jnp.float32),   # output sequence
            jax.ShapeDtypeStruct((2, B, H), jnp.float32),       # h_n
            jax.ShapeDtypeStruct((2, B, H), jnp.float32),       # c_n
        ),
        grid_spec=pltpu.PrefetchScalarGridSpec(
            num_scalar_prefetch=0,
            grid=(1,),                                          # single grid step
            in_specs=[
                pl.BlockSpec((S, 2, B, 4 * H), lambda i: (0, 0, 0, 0)),  # xg
                pl.BlockSpec((2, H, 4 * H), lambda i: (0, 0, 0)),        # W_hh^T
            ],
            out_specs=[
                pl.BlockSpec((S, B, 2 * H), lambda i: (0, 0, 0)),
                pl.BlockSpec((2, B, H), lambda i: (0, 0, 0)),
                pl.BlockSpec((2, B, H), lambda i: (0, 0, 0)),
            ],
            scratch_shapes=[
                pltpu.VMEM((2, B, H), jnp.float32),   # h carry
                pltpu.VMEM((2, B, H), jnp.float32),   # c carry
            ],
        ),
        compiler_params=pltpu.CompilerParams(
            dimension_semantics=("arbitrary",)),
    )(xg, whh)


# ---------------------------------------------------------------------------
# Encoder forward (mirrors the PyTorch module).
# ---------------------------------------------------------------------------
def encoder_forward(params, x_ids, decoder_embedding_table, weight_tying=True):
    """x_ids: (B, S) int32 -> (output (B,S,2H), (h_n, c_n) each (2,B,H))."""
    emb_table = decoder_embedding_table if weight_tying else params["embedding"]
    embedded = jnp.take(emb_table, x_ids, axis=0).astype(jnp.float32)   # (B, S, E)
    B, S, E = embedded.shape
    H = params["w_hh_f"].shape[1]

    # Hoisted input projection: one big matmul per direction, output emitted
    # time-major directly (no separate transpose pass), biases folded in.
    bias_f = params["b_ih_f"] + params["b_hh_f"]                        # (4H,)
    bias_b = params["b_ih_b"] + params["b_hh_b"]
    xg_f = jnp.einsum('bse,eg->sbg', embedded, params["w_ih_f"].T) + bias_f  # (S,B,4H)
    xg_b = jnp.einsum('bse,eg->sbg', embedded, params["w_ih_b"].T) + bias_b  # (S,B,4H)
    # Pre-reverse the backward direction's pre-activations so the kernel reads
    # a single (2, B, 4H) slab per step.
    xg = jnp.stack([xg_f, xg_b[::-1]], axis=1).astype(jnp.float32)      # (S,2,B,4H)

    whh = jnp.stack([params["w_hh_f"].T, params["w_hh_b"].T], axis=0)   # (2,H,4H)
    whh = whh.astype(jnp.float32)

    out_seq, h_n, c_n = _bilstm_pallas(xg, whh, S, B, H)

    # TODO(synk): writing the (B,S,2H) batch-first layout directly from the kernel
    # needs dynamic stores on a tiled (sublane) axis; keep this one small transpose in XLA.
    output = jnp.transpose(out_seq, (1, 0, 2))                          # (B, S, 2H)
    return output, (h_n, c_n)


# ---------------------------------------------------------------------------
# Pure-JAX reference (lax.scan) for correctness check.
# ---------------------------------------------------------------------------
def _lstm_dir_ref(x_tbe, w_ih, w_hh, b_ih, b_hh):
    S, B, E = x_tbe.shape
    H = w_ih.shape[0] // 4

    def step(carry, x_t):
        h, c = carry
        gates = x_t @ w_ih.T + h @ w_hh.T + b_ih + b_hh
        i = jax.nn.sigmoid(gates[:, 0 * H:1 * H])
        f = jax.nn.sigmoid(gates[:, 1 * H:2 * H])
        g = jnp.tanh(gates[:, 2 * H:3 * H])
        o = jax.nn.sigmoid(gates[:, 3 * H:4 * H])
        c = f * c + i * g
        h = o * jnp.tanh(c)
        return (h, c), h

    init = (jnp.zeros((B, H), jnp.float32), jnp.zeros((B, H), jnp.float32))
    (h_n, c_n), hs = jax.lax.scan(step, init, x_tbe)
    return hs, h_n, c_n


def encoder_forward_ref(params, x_ids, decoder_embedding_table, weight_tying=True):
    emb_table = decoder_embedding_table if weight_tying else params["embedding"]
    x_tbe = jnp.transpose(jnp.take(emb_table, x_ids, axis=0), (1, 0, 2))
    out_f, hn_f, cn_f = _lstm_dir_ref(
        x_tbe, params["w_ih_f"], params["w_hh_f"], params["b_ih_f"], params["b_hh_f"])
    out_b, hn_b, cn_b = _lstm_dir_ref(
        x_tbe[::-1], params["w_ih_b"], params["w_hh_b"], params["b_ih_b"], params["b_hh_b"])
    out_b = out_b[::-1]
    output = jnp.transpose(jnp.concatenate([out_f, out_b], axis=-1), (1, 0, 2))
    return output, (jnp.stack([hn_f, hn_b]), jnp.stack([cn_f, cn_b]))


if __name__ == "__main__":
    # small shapes consistent with the module's forward
    vocab_size, embed_size, hidden_size = 50, 16, 32
    batch, seq_len = 2, 8

    key = jax.random.PRNGKey(0)
    ks = jax.random.split(key, 12)

    def init(k, shape, scale=0.1):
        return (scale * jax.random.normal(k, shape)).astype(jnp.float32)

    params = {
        "embedding": init(ks[0], (vocab_size, embed_size)),
        # forward-direction LSTM params (PyTorch shapes)
        "w_ih_f": init(ks[1], (4 * hidden_size, embed_size)),
        "w_hh_f": init(ks[2], (4 * hidden_size, hidden_size)),
        "b_ih_f": init(ks[3], (4 * hidden_size,)),
        "b_hh_f": init(ks[4], (4 * hidden_size,)),
        # backward-direction LSTM params
        "w_ih_b": init(ks[5], (4 * hidden_size, embed_size)),
        "w_hh_b": init(ks[6], (4 * hidden_size, hidden_size)),
        "b_ih_b": init(ks[7], (4 * hidden_size,)),
        "b_hh_b": init(ks[8], (4 * hidden_size,)),
    }
    # decoder embedding table (used when config.weight_tying is True)
    decoder_embedding = init(ks[9], (vocab_size, embed_size))

    x = jax.random.randint(ks[10], (batch, seq_len), 0, vocab_size, dtype=jnp.int32)

    output, (h_n, c_n) = encoder_forward(params, x, decoder_embedding, weight_tying=True)
    jax.block_until_ready((output, h_n, c_n))

    assert output.shape == (batch, seq_len, 2 * hidden_size)
    assert h_n.shape == (2, batch, hidden_size)
    assert c_n.shape == (2, batch, hidden_size)

    # correctness check against pure-JAX lax.scan reference
    out_ref, (hn_ref, cn_ref) = encoder_forward_ref(
        params, x, decoder_embedding, weight_tying=True)
    assert jnp.allclose(output, out_ref, atol=1e-4, rtol=1e-4)
    assert jnp.allclose(h_n, hn_ref, atol=1e-4, rtol=1e-4)
    assert jnp.allclose(c_n, cn_ref, atol=1e-4, rtol=1e-4)

    print("KERNEL_OK")
</pallas_src>

<mosaic_0001>
module attributes {stable_mosaic.version = 11 : i64} {
  func.func @_bilstm_kernel(%arg0: i32, %arg1: memref<8x2x2x128xf32, #tpu.memory_space<vmem>>, %arg2: memref<2x32x128xf32, #tpu.memory_space<vmem>>, %arg3: memref<8x2x64xf32, #tpu.memory_space<vmem>>, %arg4: memref<2x2x32xf32, #tpu.memory_space<vmem>>, %arg5: memref<2x2x32xf32, #tpu.memory_space<vmem>>, %arg6: memref<2x2x32xf32, #tpu.memory_space<vmem>>, %arg7: memref<2x2x32xf32, #tpu.memory_space<vmem>>) attributes {dimension_semantics = [#tpu.dimension_semantics<arbitrary>], iteration_bounds = array<i64: 1>, scalar_prefetch = 0 : i64, scratch_operands = 2 : i64, tpu.core_type = #tpu.core_type<tc>, window_params = [{pipeline_mode = #tpu.pipeline_mode<synchronous>, transform_indices = @transform_0, window_bounds = array<i64: 8, 2, 2, 128>}, {pipeline_mode = #tpu.pipeline_mode<synchronous>, transform_indices = @transform_1, window_bounds = array<i64: 2, 32, 128>}, {pipeline_mode = #tpu.pipeline_mode<synchronous>, transform_indices = @transform_2, window_bounds = array<i64: 8, 2, 64>}, {pipeline_mode = #tpu.pipeline_mode<synchronous>, transform_indices = @transform_3, window_bounds = array<i64: 2, 2, 32>}, {pipeline_mode = #tpu.pipeline_mode<synchronous>, transform_indices = @transform_4, window_bounds = array<i64: 2, 2, 32>}]} {
    %cst = arith.constant 0.000000e+00 : f32
    %0 = vector.broadcast %cst : f32 to vector<2x2x32xf32>
    %c0 = arith.constant 0 : index
    %c0_0 = arith.constant 0 : index
    %c0_1 = arith.constant 0 : index
    %1 = vector.load %arg6[%c0, %c0_0, %c0_1] : memref<2x2x32xf32, #tpu.memory_space<vmem>>, vector<2x2x32xf32>
    tpu.vector_store %arg6[%c0, %c0_0, %c0_1], %0 {strides = array<i32>} : memref<2x2x32xf32, #tpu.memory_space<vmem>>, vector<2x2x32xf32>,
    %cst_2 = arith.constant 0.000000e+00 : f32
    %2 = vector.broadcast %cst_2 : f32 to vector<2x2x32xf32>
    %c0_3 = arith.constant 0 : index
    %c0_4 = arith.constant 0 : index
    %c0_5 = arith.constant 0 : index
    %3 = vector.load %arg7[%c0_3, %c0_4, %c0_5] : memref<2x2x32xf32, #tpu.memory_space<vmem>>, vector<2x2x32xf32>
    tpu.vector_store %arg7[%c0_3, %c0_4, %c0_5], %2 {strides = array<i32>} : memref<2x2x32xf32, #tpu.memory_space<vmem>>, vector<2x2x32xf32>,
    %c0_6 = arith.constant 0 : index
    %c0_7 = arith.constant 0 : index
    %c0_8 = arith.constant 0 : index
    %4 = vector.load %arg2[%c0_6, %c0_7, %c0_8] : memref<2x32x128xf32, #tpu.memory_space<vmem>>, vector<2x32x128xf32>
    %c0_i32 = arith.constant 0 : i32
    %5 = arith.index_cast %c0_i32 : i32 to index
    %c0_9 = arith.constant 0 : index
    %c0_10 = arith.constant 0 : index
    %c0_11 = arith.constant 0 : index
    %6 = vector.load %arg1[%5, %c0_9, %c0_10, %c0_11] : memref<8x2x2x128xf32, #tpu.memory_space<vmem>>, vector<1x2x2x128xf32>
    %7 = vector.shape_cast %6 : vector<1x2x2x128xf32> to vector<2x2x128xf32>
    %c0_12 = arith.constant 0 : index
    %c0_13 = arith.constant 0 : index
    %c0_14 = arith.constant 0 : index
    %8 = vector.load %arg6[%c0_12, %c0_13, %c0_14] : memref<2x2x32xf32, #tpu.memory_space<vmem>>, vector<2x2x32xf32>
    "tpu.trace_start"() <{level = 10 : i32, message = "dbh,dhg->dbg"}> : () -> ()
    %cst_15 = arith.constant dense<0.000000e+00> : vector<2x2x128xf32>
    %9 = tpu.matmul %8, %4, %cst_15 {dimension_numbers = #tpu.dot_dimension_numbers<[2], [1], [1], [2], [0, 0, 0, 1, 1, 2], [0], [0]>} : vector<2x2x32xf32>, vector<2x32x128xf32>, vector<2x2x128xf32> -> vector<2x2x128xf32>
    "tpu.trace_stop"() : () -> ()
    %10 = arith.addf %7, %9 : vector<2x2x128xf32>
    %11 = arith.negf %10 : vector<2x2x128xf32>
    %12 = math.exp %11 : vector<2x2x128xf32>
    %cst_16 = arith.constant 1.000000e+00 : f32
    %13 = vector.broadcast %cst_16 : f32 to vector<2x2x128xf32>
    %14 = arith.addf %13, %12 : vector<2x2x128xf32>
    %15 = arith.divf %13, %14 : vector<2x2x128xf32>
    %16 = math.tanh %10 : vector<2x2x128xf32>
    %17 = vector.extract_strided_slice %15 {offsets = [0, 0, 0], sizes = [2, 2, 32], strides = [1, 1, 1]} : vector<2x2x128xf32> to vector<2x2x32xf32>
    %18 = vector.extract_strided_slice %15 {offsets = [0, 0, 32], sizes = [2, 2, 32], strides = [1, 1, 1]} : vector<2x2x128xf32> to vector<2x2x32xf32>
    %19 = vector.extract_strided_slice %16 {offsets = [0, 0, 64], sizes = [2, 2, 32], strides = [1, 1, 1]} : vector<2x2x128xf32> to vector<2x2x32xf32>
    %20 = vector.extract_strided_slice %15 {offsets = [0, 0, 96], sizes = [2, 2, 32], strides = [1, 1, 1]} : vector<2x2x128xf32> to vector<2x2x32xf32>
    %c0_17 = arith.constant 0 : index
    %c0_18 = arith.constant 0 : index
    %c0_19 = arith.constant 0 : index
    %21 = vector.load %arg7[%c0_17, %c0_18, %c0_19] : memref<2x2x32xf32, #tpu.memory_space<vmem>>, vector<2x2x32xf32>
    %22 = arith.mulf %18, %21 : vector<2x2x32xf32>
    %23 = arith.mulf %17, %19 : vector<2x2x32xf32>
    %24 = arith.addf %22, %23 : vector<2x2x32xf32>
    %25 = math.tanh %24 : vector<2x2x32xf32>
    %26 = arith.mulf %20, %25 : vector<2x2x32xf32>
    %c0_20 = arith.constant 0 : index
    %c0_21 = arith.constant 0 : index
    %c0_22 = arith.constant 0 : index
    %27 = vector.load %arg6[%c0_20, %c0_21, %c0_22] : memref<2x2x32xf32, #tpu.memory_space<vmem>>, vector<2x2x32xf32>
    tpu.vector_store %arg6[%c0_20, %c0_21, %c0_22], %26 {strides = array<i32>} : memref<2x2x32xf32, #tpu.memory_space<vmem>>, vector<2x2x32xf32>,
    %c0_23 = arith.constant 0 : index
    %c0_24 = arith.constant 0 : index
    %c0_25 = arith.constant 0 : index
    %28 = vector.load %arg7[%c0_23, %c0_24, %c0_25] : memref<2x2x32xf32, #tpu.memory_space<vmem>>, vector<2x2x32xf32>
    tpu.vector_store %arg7[%c0_23, %c0_24, %c0_25], %24 {strides = array<i32>} : memref<2x2x32xf32, #tpu.memory_space<vmem>>, vector<2x2x32xf32>,
    %29 = vector.extract_strided_slice %26 {offsets = [0, 0, 0], sizes = [1, 2, 32], strides = [1, 1, 1]} : vector<2x2x32xf32> to vector<1x2x32xf32>
    %30 = vector.shape_cast %29 : vector<1x2x32xf32> to vector<2x32xf32>
    %31 = vector.shape_cast %30 : vector<2x32xf32> to vector<1x2x32xf32>
    %32 = arith.index_cast %c0_i32 : i32 to index
    %c0_26 = arith.constant 0 : index
    %c0_27 = arith.constant 0 : index
    %33 = vector.load %arg3[%32, %c0_26, %c0_27] : memref<8x2x64xf32, #tpu.memory_space<vmem>>, vector<1x2x32xf32>
    tpu.vector_store %arg3[%32, %c0_26, %c0_27], %31 {strides = array<i32>} : memref<8x2x64xf32, #tpu.memory_space<vmem>>, vector<1x2x32xf32>,
    %34 = vector.extract_strided_slice %26 {offsets = [1, 0, 0], sizes = [1, 2, 32], strides = [1, 1, 1]} : vector<2x2x32xf32> to vector<1x2x32xf32>
    %35 = vector.shape_cast %34 : vector<1x2x32xf32> to vector<2x32xf32>
    %36 = vector.shape_cast %35 : vector<2x32xf32> to vector<1x2x32xf32>
    %c7_i32 = arith.constant 7 : i32
    %37 = arith.subi %c7_i32, %c0_i32 : i32
    %38 = arith.index_cast %37 : i32 to index
    %c0_28 = arith.constant 0 : index
    %c32 = arith.constant 32 : index
    %39 = vector.load %arg3[%38, %c0_28, %c32] : memref<8x2x64xf32, #tpu.memory_space<vmem>>, vector<1x2x32xf32>
    tpu.vector_store %arg3[%38, %c0_28, %c32], %36 {strides = array<i32>} : memref<8x2x64xf32, #tpu.memory_space<vmem>>, vector<1x2x32xf32>,
    %c1_i32 = arith.constant 1 : i32
    %40 = arith.index_cast %c1_i32 : i32 to index
    %c0_29 = arith.constant 0 : index
    %c0_30 = arith.constant 0 : index
    %c0_31 = arith.constant 0 : index
    %41 = vector.load %arg1[%40, %c0_29, %c0_30, %c0_31] : memref<8x2x2x128xf32, #tpu.memory_space<vmem>>, vector<1x2x2x128xf32>
    %42 = vector.shape_cast %41 : vector<1x2x2x128xf32> to vector<2x2x128xf32>
    %c0_32 = arith.constant 0 : index
    %c0_33 = arith.constant 0 : index
    %c0_34 = arith.constant 0 : index
    %43 = vector.load %arg6[%c0_32, %c0_33, %c0_34] : memref<2x2x32xf32, #tpu.memory_space<vmem>>, vector<2x2x32xf32>
    "tpu.trace_start"() <{level = 10 : i32, message = "dbh,dhg->dbg"}> : () -> ()
    %cst_35 = arith.constant dense<0.000000e+00> : vector<2x2x128xf32>
    %44 = tpu.matmul %43, %4, %cst_35 {dimension_numbers = #tpu.dot_dimension_numbers<[2], [1], [1], [2], [0, 0, 0, 1, 1, 2], [0], [0]>} : vector<2x2x32xf32>, vector<2x32x128xf32>, vector<2x2x128xf32> -> vector<2x2x128xf32>
    "tpu.trace_stop"() : () -> ()
    %45 = arith.addf %42, %44 : vector<2x2x128xf32>
    %46 = arith.negf %45 : vector<2x2x128xf32>
    %47 = math.exp %46 : vector<2x2x128xf32>
    %cst_36 = arith.constant 1.000000e+00 : f32
    %48 = vector.broadcast %cst_36 : f32 to vector<2x2x128xf32>
    %49 = arith.addf %48, %47 : vector<2x2x128xf32>
    %50 = arith.divf %48, %49 : vector<2x2x128xf32>
    %51 = math.tanh %45 : vector<2x2x128xf32>
    %52 = vector.extract_strided_slice %50 {offsets = [0, 0, 0], sizes = [2, 2, 32], strides = [1, 1, 1]} : vector<2x2x128xf32> to vector<2x2x32xf32>
    %53 = vector.extract_strided_slice %50 {offsets = [0, 0, 32], sizes = [2, 2, 32], strides = [1, 1, 1]} : vector<2x2x128xf32> to vector<2x2x32xf32>
    %54 = vector.extract_strided_slice %51 {offsets = [0, 0, 64], sizes = [2, 2, 32], strides = [1, 1, 1]} : vector<2x2x128xf32> to vector<2x2x32xf32>
    %55 = vector.extract_strided_slice %50 {offsets = [0, 0, 96], sizes = [2, 2, 32], strides = [1, 1, 1]} : vector<2x2x128xf32> to vector<2x2x32xf32>
    %c0_37 = arith.constant 0 : index
    %c0_38 = arith.constant 0 : index
    %c0_39 = arith.constant 0 : index
    %56 = vector.load %arg7[%c0_37, %c0_38, %c0_39] : memref<2x2x32xf32, #tpu.memory_space<vmem>>, vector<2x2x32xf32>
    %57 = arith.mulf %53, %56 : vector<2x2x32xf32>
    %58 = arith.mulf %52, %54 : vector<2x2x32xf32>
    %59 = arith.addf %57, %58 : vector<2x2x32xf32>
    %60 = math.tanh %59 : vector<2x2x32xf32>
    %61 = arith.mulf %55, %60 : vector<2x2x32xf32>
    %c0_40 = arith.constant 0 : index
    %c0_41 = arith.constant 0 : index
    %c0_42 = arith.constant 0 : index
    %62 = vector.load %arg6[%c0_40, %c0_41, %c0_42] : memref<2x2x32xf32, #tpu.memory_space<vmem>>, vector<2x2x32xf32>
    tpu.vector_store %arg6[%c0_40, %c0_41, %c0_42], %61 {strides = array<i32>} : memref<2x2x32xf32, #tpu.memory_space<vmem>>, vector<2x2x32xf32>,
    %c0_43 = arith.constant 0 : index
    %c0_44 = arith.constant 0 : index
    %c0_45 = arith.constant 0 : index
    %63 = vector.load %arg7[%c0_43, %c0_44, %c0_45] : memref<2x2x32xf32, #tpu.memory_space<vmem>>, vector<2x2x32xf32>
    tpu.vector_store %arg7[%c0_43, %c0_44, %c0_45], %59 {strides = array<i32>} : memref<2x2x32xf32, #tpu.memory_space<vmem>>, vector<2x2x32xf32>,
    %64 = vector.extract_strided_slice %61 {offsets = [0, 0, 0], sizes = [1, 2, 32], strides = [1, 1, 1]} : vector<2x2x32xf32> to vector<1x2x32xf32>
    %65 = vector.shape_cast %64 : vector<1x2x32xf32> to vector<2x32xf32>
    %66 = vector.shape_cast %65 : vector<2x32xf32> to vector<1x2x32xf32>
    %67 = arith.index_cast %c1_i32 : i32 to index
    %c0_46 = arith.constant 0 : index
    %c0_47 = arith.constant 0 : index
    %68 = vector.load %arg3[%67, %c0_46, %c0_47] : memref<8x2x64xf32, #tpu.memory_space<vmem>>, vector<1x2x32xf32>
    tpu.vector_store %arg3[%67, %c0_46, %c0_47], %66 {strides = array<i32>} : memref<8x2x64xf32, #tpu.memory_space<vmem>>, vector<1x2x32xf32>,
    %69 = vector.extract_strided_slice %61 {offsets = [1, 0, 0], sizes = [1, 2, 32], strides = [1, 1, 1]} : vector<2x2x32xf32> to vector<1x2x32xf32>
    %70 = vector.shape_cast %69 : vector<1x2x32xf32> to vector<2x32xf32>
    %71 = vector.shape_cast %70 : vector<2x32xf32> to vector<1x2x32xf32>
    %c7_i32_48 = arith.constant 7 : i32
    %72 = arith.subi %c7_i32_48, %c1_i32 : i32
    %73 = arith.index_cast %72 : i32 to index
    %c0_49 = arith.constant 0 : index
    %c32_50 = arith.constant 32 : index
    %74 = vector.load %arg3[%73, %c0_49, %c32_50] : memref<8x2x64xf32, #tpu.memory_space<vmem>>, vector<1x2x32xf32>
    tpu.vector_store %arg3[%73, %c0_49, %c32_50], %71 {strides = array<i32>} : memref<8x2x64xf32, #tpu.memory_space<vmem>>, vector<1x2x32xf32>,
    %c2_i32 = arith.constant 2 : i32
    %75 = arith.index_cast %c2_i32 : i32 to index
    %c0_51 = arith.constant 0 : index
    %c0_52 = arith.constant 0 : index
    %c0_53 = arith.constant 0 : index
    %76 = vector.load %arg1[%75, %c0_51, %c0_52, %c0_53] : memref<8x2x2x128xf32, #tpu.memory_space<vmem>>, vector<1x2x2x128xf32>
    %77 = vector.shape_cast %76 : vector<1x2x2x128xf32> to vector<2x2x128xf32>
    %c0_54 = arith.constant 0 : index
    %c0_55 = arith.constant 0 : index
    %c0_56 = arith.constant 0 : index
    %78 = vector.load %arg6[%c0_54, %c0_55, %c0_56] : memref<2x2x32xf32, #tpu.memory_space<vmem>>, vector<2x2x32xf32>
    "tpu.trace_start"() <{level = 10 : i32, message = "dbh,dhg->dbg"}> : () -> ()
    %cst_57 = arith.constant dense<0.000000e+00> : vector<2x2x128xf32>
    %79 = tpu.matmul %78, %4, %cst_57 {dimension_numbers = #tpu.dot_dimension_numbers<[2], [1], [1], [2], [0, 0, 0, 1, 1, 2], [0], [0]>} : vector<2x2x32xf32>, vector<2x32x128xf32>, vector<2x2x128xf32> -> vector<2x2x128xf32>
    "tpu.trace_stop"() : () -> ()
    %80 = arith.addf %77, %79 : vector<2x2x128xf32>
    %81 = arith.negf %80 : vector<2x2x128xf32>
    %82 = math.exp %81 : vector<2x2x128xf32>
    %cst_58 = arith.constant 1.000000e+00 : f32
    %83 = vector.broadcast %cst_58 : f32 to vector<2x2x128xf32>
    %84 = arith.addf %83, %82 : vector<2x2x128xf32>
    %85 = arith.divf %83, %84 : vector<2x2x128xf32>
    %86 = math.tanh %80 : vector<2x2x128xf32>
    %87 = vector.extract_strided_slice %85 {offsets = [0, 0, 0], sizes = [2, 2, 32], strides = [1, 1, 1]} : vector<2x2x128xf32> to vector<2x2x32xf32>
    %88 = vector.extract_strided_slice %85 {offsets = [0, 0, 32], sizes = [2, 2, 32], strides = [1, 1, 1]} : vector<2x2x128xf32> to vector<2x2x32xf32>
    %89 = vector.extract_strided_slice %86 {offsets = [0, 0, 64], sizes = [2, 2, 32], strides = [1, 1, 1]} : vector<2x2x128xf32> to vector<2x2x32xf32>
    %90 = vector.extract_strided_slice %85 {offsets = [0, 0, 96], sizes = [2, 2, 32], strides = [1, 1, 1]} : vector<2x2x128xf32> to vector<2x2x32xf32>
    %c0_59 = arith.constant 0 : index
    %c0_60 = arith.constant 0 : index
    %c0_61 = arith.constant 0 : index
    %91 = vector.load %arg7[%c0_59, %c0_60, %c0_61] : memref<2x2x32xf32, #tpu.memory_space<vmem>>, vector<2x2x32xf32>
    %92 = arith.mulf %88, %91 : vector<2x2x32xf32>
    %93 = arith.mulf %87, %89 : vector<2x2x32xf32>
    %94 = arith.addf %92, %93 : vector<2x2x32xf32>
    %95 = math.tanh %94 : vector<2x2x32xf32>
    %96 = arith.mulf %90, %95 : vector<2x2x32xf32>
    %c0_62 = arith.constant 0 : index
    %c0_63 = arith.constant 0 : index
    %c0_64 = arith.constant 0 : index
    %97 = vector.load %arg6[%c0_62, %c0_63, %c0_64] : memref<2x2x32xf32, #tpu.memory_space<vmem>>, vector<2x2x32xf32>
    tpu.vector_store %arg6[%c0_62, %c0_63, %c0_64], %96 {strides = array<i32>} : memref<2x2x32xf32, #tpu.memory_space<vmem>>, vector<2x2x32xf32>,
    %c0_65 = arith.constant 0 : index
    %c0_66 = arith.constant 0 : index
    %c0_67 = arith.constant 0 : index
    %98 = vector.load %arg7[%c0_65, %c0_66, %c0_67] : memref<2x2x32xf32, #tpu.memory_space<vmem>>, vector<2x2x32xf32>
    tpu.vector_store %arg7[%c0_65, %c0_66, %c0_67], %94 {strides = array<i32>} : memref<2x2x32xf32, #tpu.memory_space<vmem>>, vector<2x2x32xf32>,
    %99 = vector.extract_strided_slice %96 {offsets = [0, 0, 0], sizes = [1, 2, 32], strides = [1, 1, 1]} : vector<2x2x32xf32> to vector<1x2x32xf32>
    %100 = vector.shape_cast %99 : vector<1x2x32xf32> to vector<2x32xf32>
    %101 = vector.shape_cast %100 : vector<2x32xf32> to vector<1x2x32xf32>
    %102 = arith.index_cast %c2_i32 : i32 to index
    %c0_68 = arith.constant 0 : index
    %c0_69 = arith.constant 0 : index
    %103 = vector.load %arg3[%102, %c0_68, %c0_69] : memref<8x2x64xf32, #tpu.memory_space<vmem>>, vector<1x2x32xf32>
    tpu.vector_store %arg3[%102, %c0_68, %c0_69], %101 {strides = array<i32>} : memref<8x2x64xf32, #tpu.memory_space<vmem>>, vector<1x2x32xf32>,
    %104 = vector.extract_strided_slice %96 {offsets = [1, 0, 0], sizes = [1, 2, 32], strides = [1, 1, 1]} : vector<2x2x32xf32> to vector<1x2x32xf32>
    %105 = vector.shape_cast %104 : vector<1x2x32xf32> to vector<2x32xf32>
    %106 = vector.shape_cast %105 : vector<2x32xf32> to vector<1x2x32xf32>
    %c7_i32_70 = arith.constant 7 : i32
    %107 = arith.subi %c7_i32_70, %c2_i32 : i32
    %108 = arith.index_cast %107 : i32 to index
    %c0_71 = arith.constant 0 : index
    %c32_72 = arith.constant 32 : index
    %109 = vector.load %arg3[%108, %c0_71, %c32_72] : memref<8x2x64xf32, #tpu.memory_space<vmem>>, vector<1x2x32xf32>
    tpu.vector_store %arg3[%108, %c0_71, %c32_72], %106 {strides = array<i32>} : memref<8x2x64xf32, #tpu.memory_space<vmem>>, vector<1x2x32xf32>,
    %c3_i32 = arith.constant 3 : i32
    %110 = arith.index_cast %c3_i32 : i32 to index
    %c0_73 = arith.constant 0 : index
    %c0_74 = arith.constant 0 : index
    %c0_75 = arith.constant 0 : index
    %111 = vector.load %arg1[%110, %c0_73, %c0_74, %c0_75] : memref<8x2x2x128xf32, #tpu.memory_space<vmem>>, vector<1x2x2x128xf32>
    %112 = vector.shape_cast %111 : vector<1x2x2x128xf32> to vector<2x2x128xf32>
    %c0_76 = arith.constant 0 : index
    %c0_77 = arith.constant 0 : index
    %c0_78 = arith.constant 0 : index
    %113 = vector.load %arg6[%c0_76, %c0_77, %c0_78] : memref<2x2x32xf32, #tpu.memory_space<vmem>>, vector<2x2x32xf32>
    "tpu.trace_start"() <{level = 10 : i32, message = "dbh,dhg->dbg"}> : () -> ()
    %cst_79 = arith.constant dense<0.000000e+00> : vector<2x2x128xf32>
    %114 = tpu.matmul %113, %4, %cst_79 {dimension_numbers = #tpu.dot_dimension_numbers<[2], [1], [1], [2], [0, 0, 0, 1, 1, 2], [0], [0]>} : vector<2x2x32xf32>, vector<2x32x128xf32>, vector<2x2x128xf32> -> vector<2x2x128xf32>
    "tpu.trace_stop"() : () -> ()
    %115 = arith.addf %112, %114 : vector<2x2x128xf32>
    %116 = arith.negf %115 : vector<2x2x128xf32>
    %117 = math.exp %116 : vector<2x2x128xf32>
    %cst_80 = arith.constant 1.000000e+00 : f32
    %118 = vector.broadcast %cst_80 : f32 to vector<2x2x128xf32>
    %119 = arith.addf %118, %117 : vector<2x2x128xf32>
    %120 = arith.divf %118, %119 : vector<2x2x128xf32>
    %121 = math.tanh %115 : vector<2x2x128xf32>
    %122 = vector.extract_strided_slice %120 {offsets = [0, 0, 0], sizes = [2, 2, 32], strides = [1, 1, 1]} : vector<2x2x128xf32> to vector<2x2x32xf32>
    %123 = vector.extract_strided_slice %120 {offsets = [0, 0, 32], sizes = [2, 2, 32], strides = [1, 1, 1]} : vector<2x2x128xf32> to vector<2x2x32xf32>
    %124 = vector.extract_strided_slice %121 {offsets = [0, 0, 64], sizes = [2, 2, 32], strides = [1, 1, 1]} : vector<2x2x128xf32> to vector<2x2x32xf32>
    %125 = vector.extract_strided_slice %120 {offsets = [0, 0, 96], sizes = [2, 2, 32], strides = [1, 1, 1]} : vector<2x2x128xf32> to vector<2x2x32xf32>
    %c0_81 = arith.constant 0 : index
    %c0_82 = arith.constant 0 : index
    %c0_83 = arith.constant 0 : index
    %126 = vector.load %arg7[%c0_81, %c0_82, %c0_83] : memref<2x2x32xf32, #tpu.memory_space<vmem>>, vector<2x2x32xf32>
    %127 = arith.mulf %123, %126 : vector<2x2x32xf32>
    %128 = arith.mulf %122, %124 : vector<2x2x32xf32>
    %129 = arith.addf %127, %128 : vector<2x2x32xf32>
    %130 = math.tanh %129 : vector<2x2x32xf32>
    %131 = arith.mulf %125, %130 : vector<2x2x32xf32>
    %c0_84 = arith.constant 0 : index
    %c0_85 = arith.constant 0 : index
    %c0_86 = arith.constant 0 : index
    %132 = vector.load %arg6[%c0_84, %c0_85, %c0_86] : memref<2x2x32xf32, #tpu.memory_space<vmem>>, vector<2x2x32xf32>
    tpu.vector_store %arg6[%c0_84, %c0_85, %c0_86], %131 {strides = array<i32>} : memref<2x2x32xf32, #tpu.memory_space<vmem>>, vector<2x2x32xf32>,
    %c0_87 = arith.constant 0 : index
    %c0_88 = arith.constant 0 : index
    %c0_89 = arith.constant 0 : index
    %133 = vector.load %arg7[%c0_87, %c0_88, %c0_89] : memref<2x2x32xf32, #tpu.memory_space<vmem>>, vector<2x2x32xf32>
    tpu.vector_store %arg7[%c0_87, %c0_88, %c0_89], %129 {strides = array<i32>} : memref<2x2x32xf32, #tpu.memory_space<vmem>>, vector<2x2x32xf32>,
    %134 = vector.extract_strided_slice %131 {offsets = [0, 0, 0], sizes = [1, 2, 32], strides = [1, 1, 1]} : vector<2x2x32xf32> to vector<1x2x32xf32>
    %135 = vector.shape_cast %134 : vector<1x2x32xf32> to vector<2x32xf32>
    %136 = vector.shape_cast %135 : vector<2x32xf32> to vector<1x2x32xf32>
    %137 = arith.index_cast %c3_i32 : i32 to index
    %c0_90 = arith.constant 0 : index
    %c0_91 = arith.constant 0 : index
    %138 = vector.load %arg3[%137, %c0_90, %c0_91] : memref<8x2x64xf32, #tpu.memory_space<vmem>>, vector<1x2x32xf32>
    tpu.vector_store %arg3[%137, %c0_90, %c0_91], %136 {strides = array<i32>} : memref<8x2x64xf32, #tpu.memory_space<vmem>>, vector<1x2x32xf32>,
    %139 = vector.extract_strided_slice %131 {offsets = [1, 0, 0], sizes = [1, 2, 32], strides = [1, 1, 1]} : vector<2x2x32xf32> to vector<1x2x32xf32>
    %140 = vector.shape_cast %139 : vector<1x2x32xf32> to vector<2x32xf32>
    %141 = vector.shape_cast %140 : vector<2x32xf32> to vector<1x2x32xf32>
    %c7_i32_92 = arith.constant 7 : i32
    %142 = arith.subi %c7_i32_92, %c3_i32 : i32
    %143 = arith.index_cast %142 : i32 to index
    %c0_93 = arith.constant 0 : index
    %c32_94 = arith.constant 32 : index
    %144 = vector.load %arg3[%143, %c0_93, %c32_94] : memref<8x2x64xf32, #tpu.memory_space<vmem>>, vector<1x2x32xf32>
    tpu.vector_store %arg3[%143, %c0_93, %c32_94], %141 {strides = array<i32>} : memref<8x2x64xf32, #tpu.memory_space<vmem>>, vector<1x2x32xf32>,
    %c4_i32 = arith.constant 4 : i32
    %145 = arith.index_cast %c4_i32 : i32 to index
    %c0_95 = arith.constant 0 : index
    %c0_96 = arith.constant 0 : index
    %c0_97 = arith.constant 0 : index
    %146 = vector.load %arg1[%145, %c0_95, %c0_96, %c0_97] : memref<8x2x2x128xf32, #tpu.memory_space<vmem>>, vector<1x2x2x128xf32>
    %147 = vector.shape_cast %146 : vector<1x2x2x128xf32> to vector<2x2x128xf32>
    %c0_98 = arith.constant 0 : index
    %c0_99 = arith.constant 0 : index
    %c0_100 = arith.constant 0 : index
    %148 = vector.load %arg6[%c0_98, %c0_99, %c0_100] : memref<2x2x32xf32, #tpu.memory_space<vmem>>, vector<2x2x32xf32>
    "tpu.trace_start"() <{level = 10 : i32, message = "dbh,dhg->dbg"}> : () -> ()
    %cst_101 = arith.constant dense<0.000000e+00> : vector<2x2x128xf32>
    %149 = tpu.matmul %148, %4, %cst_101 {dimension_numbers = #tpu.dot_dimension_numbers<[2], [1], [1], [2], [0, 0, 0, 1, 1, 2], [0], [0]>} : vector<2x2x32xf32>, vector<2x32x128xf32>, vector<2x2x128xf32> -> vector<2x2x128xf32>
    "tpu.trace_stop"() : () -> ()
    %150 = arith.addf %147, %149 : vector<2x2x128xf32>
    %151 = arith.negf %150 : vector<2x2x128xf32>
    %152 = math.exp %151 : vector<2x2x128xf32>
    %cst_102 = arith.constant 1.000000e+00 : f32
    %153 = vector.broadcast %cst_102 : f32 to vector<2x2x128xf32>
    %154 = arith.addf %153, %152 : vector<2x2x128xf32>
    %155 = arith.divf %153, %154 : vector<2x2x128xf32>
    %156 = math.tanh %150 : vector<2x2x128xf32>
    %157 = vector.extract_strided_slice %155 {offsets = [0, 0, 0], sizes = [2, 2, 32], strides = [1, 1, 1]} : vector<2x2x128xf32> to vector<2x2x32xf32>
    %158 = vector.extract_strided_slice %155 {offsets = [0, 0, 32], sizes = [2, 2, 32], strides = [1, 1, 1]} : vector<2x2x128xf32> to vector<2x2x32xf32>
    %159 = vector.extract_strided_slice %156 {offsets = [0, 0, 64], sizes = [2, 2, 32], strides = [1, 1, 1]} : vector<2x2x128xf32> to vector<2x2x32xf32>
    %160 = vector.extract_strided_slice %155 {offsets = [0, 0, 96], sizes = [2, 2, 32], strides = [1, 1, 1]} : vector<2x2x128xf32> to vector<2x2x32xf32>
    %c0_103 = arith.constant 0 : index
    %c0_104 = arith.constant 0 : index
    %c0_105 = arith.constant 0 : index
    %161 = vector.load %arg7[%c0_103, %c0_104, %c0_105] : memref<2x2x32xf32, #tpu.memory_space<vmem>>, vector<2x2x32xf32>
    %162 = arith.mulf %158, %161 : vector<2x2x32xf32>
    %163 = arith.mulf %157, %159 : vector<2x2x32xf32>
    %164 = arith.addf %162, %163 : vector<2x2x32xf32>
    %165 = math.tanh %164 : vector<2x2x32xf32>
    %166 = arith.mulf %160, %165 : vector<2x2x32xf32>
    %c0_106 = arith.constant 0 : index
    %c0_107 = arith.constant 0 : index
    %c0_108 = arith.constant 0 : index
    %167 = vector.load %arg6[%c0_106, %c0_107, %c0_108] : memref<2x2x32xf32, #tpu.memory_space<vmem>>, vector<2x2x32xf32>
    tpu.vector_store %arg6[%c0_106, %c0_107, %c0_108], %166 {strides = array<i32>} : memref<2x2x32xf32, #tpu.memory_space<vmem>>, vector<2x2x32xf32>,
    %c0_109 = arith.constant 0 : index
    %c0_110 = arith.constant 0 : index
    %c0_111 = arith.constant 0 : index
    %168 = vector.load %arg7[%c0_109, %c0_110, %c0_111] : memref<2x2x32xf32, #tpu.memory_space<vmem>>, vector<2x2x32xf32>
    tpu.vector_store %arg7[%c0_109, %c0_110, %c0_111], %164 {strides = array<i32>} : memref<2x2x32xf32, #tpu.memory_space<vmem>>, vector<2x2x32xf32>,
    %169 = vector.extract_strided_slice %166 {offsets = [0, 0, 0], sizes = [1, 2, 32], strides = [1, 1, 1]} : vector<2x2x32xf32> to vector<1x2x32xf32>
    %170 = vector.shape_cast %169 : vector<1x2x32xf32> to vector<2x32xf32>
    %171 = vector.shape_cast %170 : vector<2x32xf32> to vector<1x2x32xf32>
    %172 = arith.index_cast %c4_i32 : i32 to index
    %c0_112 = arith.constant 0 : index
    %c0_113 = arith.constant 0 : index
    %173 = vector.load %arg3[%172, %c0_112, %c0_113] : memref<8x2x64xf32, #tpu.memory_space<vmem>>, vector<1x2x32xf32>
    tpu.vector_store %arg3[%172, %c0_112, %c0_113], %171 {strides = array<i32>} : memref<8x2x64xf32, #tpu.memory_space<vmem>>, vector<1x2x32xf32>,
    %174 = vector.extract_strided_slice %166 {offsets = [1, 0, 0], sizes = [1, 2, 32], strides = [1, 1, 1]} : vector<2x2x32xf32> to vector<1x2x32xf32>
    %175 = vector.shape_cast %174 : vector<1x2x32xf32> to vector<2x32xf32>
    %176 = vector.shape_cast %175 : vector<2x32xf32> to vector<1x2x32xf32>
    %c7_i32_114 = arith.constant 7 : i32
    %177 = arith.subi %c7_i32_114, %c4_i32 : i32
    %178 = arith.index_cast %177 : i32 to index
    %c0_115 = arith.constant 0 : index
    %c32_116 = arith.constant 32 : index
    %179 = vector.load %arg3[%178, %c0_115, %c32_116] : memref<8x2x64xf32, #tpu.memory_space<vmem>>, vector<1x2x32xf32>
    tpu.vector_store %arg3[%178, %c0_115, %c32_116], %176 {strides = array<i32>} : memref<8x2x64xf32, #tpu.memory_space<vmem>>, vector<1x2x32xf32>,
    %c5_i32 = arith.constant 5 : i32
    %180 = arith.index_cast %c5_i32 : i32 to index
    %c0_117 = arith.constant 0 : index
    %c0_118 = arith.constant 0 : index
    %c0_119 = arith.constant 0 : index
    %181 = vector.load %arg1[%180, %c0_117, %c0_118, %c0_119] : memref<8x2x2x128xf32, #tpu.memory_space<vmem>>, vector<1x2x2x128xf32>
    %182 = vector.shape_cast %181 : vector<1x2x2x128xf32> to vector<2x2x128xf32>
    %c0_120 = arith.constant 0 : index
    %c0_121 = arith.constant 0 : index
    %c0_122 = arith.constant 0 : index
    %183 = vector.load %arg6[%c0_120, %c0_121, %c0_122] : memref<2x2x32xf32, #tpu.memory_space<vmem>>, vector<2x2x32xf32>
    "tpu.trace_start"() <{level = 10 : i32, message = "dbh,dhg->dbg"}> : () -> ()
    %cst_123 = arith.constant dense<0.000000e+00> : vector<2x2x128xf32>
    %184 = tpu.matmul %183, %4, %cst_123 {dimension_numbers = #tpu.dot_dimension_numbers<[2], [1], [1], [2], [0, 0, 0, 1, 1, 2], [0], [0]>} : vector<2x2x32xf32>, vector<2x32x128xf32>, vector<2x2x128xf32> -> vector<2x2x128xf32>
    "tpu.trace_stop"() : () -> ()
    %185 = arith.addf %182, %184 : vector<2x2x128xf32>
    %186 = arith.negf %185 : vector<2x2x128xf32>
    %187 = math.exp %186 : vector<2x2x128xf32>
    %cst_124 = arith.constant 1.000000e+00 : f32
    %188 = vector.broadcast %cst_124 : f32 to vector<2x2x128xf32>
    %189 = arith.addf %188, %187 : vector<2x2x128xf32>
    %190 = arith.divf %188, %189 : vector<2x2x128xf32>
    %191 = math.tanh %185 : vector<2x2x128xf32>
    %192 = vector.extract_strided_slice %190 {offsets = [0, 0, 0], sizes = [2, 2, 32], strides = [1, 1, 1]} : vector<2x2x128xf32> to vector<2x2x32xf32>
    %193 = vector.extract_strided_slice %190 {offsets = [0, 0, 32], sizes = [2, 2, 32], strides = [1, 1, 1]} : vector<2x2x128xf32> to vector<2x2x32xf32>
    %194 = vector.extract_strided_slice %191 {offsets = [0, 0, 64], sizes = [2, 2, 32], strides = [1, 1, 1]} : vector<2x2x128xf32> to vector<2x2x32xf32>
    %195 = vector.extract_strided_slice %190 {offsets = [0, 0, 96], sizes = [2, 2, 32], strides = [1, 1, 1]} : vector<2x2x128xf32> to vector<2x2x32xf32>
    %c0_125 = arith.constant 0 : index
    %c0_126 = arith.constant 0 : index
    %c0_127 = arith.constant 0 : index
    %196 = vector.load %arg7[%c0_125, %c0_126, %c0_127] : memref<2x2x32xf32, #tpu.memory_space<vmem>>, vector<2x2x32xf32>
    %197 = arith.mulf %193, %196 : vector<2x2x32xf32>
    %198 = arith.mulf %192, %194 : vector<2x2x32xf32>
    %199 = arith.addf %197, %198 : vector<2x2x32xf32>
    %200 = math.tanh %199 : vector<2x2x32xf32>
    %201 = arith.mulf %195, %200 : vector<2x2x32xf32>
    %c0_128 = arith.constant 0 : index
    %c0_129 = arith.constant 0 : index
    %c0_130 = arith.constant 0 : index
    %202 = vector.load %arg6[%c0_128, %c0_129, %c0_130] : memref<2x2x32xf32, #tpu.memory_space<vmem>>, vector<2x2x32xf32>
    tpu.vector_store %arg6[%c0_128, %c0_129, %c0_130], %201 {strides = array<i32>} : memref<2x2x32xf32, #tpu.memory_space<vmem>>, vector<2x2x32xf32>,
    %c0_131 = arith.constant 0 : index
    %c0_132 = arith.constant 0 : index
    %c0_133 = arith.constant 0 : index
    %203 = vector.load %arg7[%c0_131, %c0_132, %c0_133] : memref<2x2x32xf32, #tpu.memory_space<vmem>>, vector<2x2x32xf32>
    tpu.vector_store %arg7[%c0_131, %c0_132, %c0_133], %199 {strides = array<i32>} : memref<2x2x32xf32, #tpu.memory_space<vmem>>, vector<2x2x32xf32>,
    %204 = vector.extract_strided_slice %201 {offsets = [0, 0, 0], sizes = [1, 2, 32], strides = [1, 1, 1]} : vector<2x2x32xf32> to vector<1x2x32xf32>
    %205 = vector.shape_cast %204 : vector<1x2x32xf32> to vector<2x32xf32>
    %206 = vector.shape_cast %205 : vector<2x32xf32> to vector<1x2x32xf32>
    %207 = arith.index_cast %c5_i32 : i32 to index
    %c0_134 = arith.constant 0 : index
    %c0_135 = arith.constant 0 : index
    %208 = vector.load %arg3[%207, %c0_134, %c0_135] : memref<8x2x64xf32, #tpu.memory_space<vmem>>, vector<1x2x32xf32>
    tpu.vector_store %arg3[%207, %c0_134, %c0_135], %206 {strides = array<i32>} : memref<8x2x64xf32, #tpu.memory_space<vmem>>, vector<1x2x32xf32>,
    %209 = vector.extract_strided_slice %201 {offsets = [1, 0, 0], sizes = [1, 2, 32], strides = [1, 1, 1]} : vector<2x2x32xf32> to vector<1x2x32xf32>
    %210 = vector.shape_cast %209 : vector<1x2x32xf32> to vector<2x32xf32>
    %211 = vector.shape_cast %210 : vector<2x32xf32> to vector<1x2x32xf32>
    %c7_i32_136 = arith.constant 7 : i32
    %212 = arith.subi %c7_i32_136, %c5_i32 : i32
    %213 = arith.index_cast %212 : i32 to index
    %c0_137 = arith.constant 0 : index
    %c32_138 = arith.constant 32 : index
    %214 = vector.load %arg3[%213, %c0_137, %c32_138] : memref<8x2x64xf32, #tpu.memory_space<vmem>>, vector<1x2x32xf32>
    tpu.vector_store %arg3[%213, %c0_137, %c32_138], %211 {strides = array<i32>} : memref<8x2x64xf32, #tpu.memory_space<vmem>>, vector<1x2x32xf32>,
    %c6_i32 = arith.constant 6 : i32
    %215 = arith.index_cast %c6_i32 : i32 to index
    %c0_139 = arith.constant 0 : index
    %c0_140 = arith.constant 0 : index
    %c0_141 = arith.constant 0 : index
    %216 = vector.load %arg1[%215, %c0_139, %c0_140, %c0_141] : memref<8x2x2x128xf32, #tpu.memory_space<vmem>>, vector<1x2x2x128xf32>
    %217 = vector.shape_cast %216 : vector<1x2x2x128xf32> to vector<2x2x128xf32>
    %c0_142 = arith.constant 0 : index
    %c0_143 = arith.constant 0 : index
    %c0_144 = arith.constant 0 : index
    %218 = vector.load %arg6[%c0_142, %c0_143, %c0_144] : memref<2x2x32xf32, #tpu.memory_space<vmem>>, vector<2x2x32xf32>
    "tpu.trace_start"() <{level = 10 : i32, message = "dbh,dhg->dbg"}> : () -> ()
    %cst_145 = arith.constant dense<0.000000e+00> : vector<2x2x128xf32>
    %219 = tpu.matmul %218, %4, %cst_145 {dimension_numbers = #tpu.dot_dimension_numbers<[2], [1], [1], [2], [0, 0, 0, 1, 1, 2], [0], [0]>} : vector<2x2x32xf32>, vector<2x32x128xf32>, vector<2x2x128xf32> -> vector<2x2x128xf32>
    "tpu.trace_stop"() : () -> ()
    %220 = arith.addf %217, %219 : vector<2x2x128xf32>
    %221 = arith.negf %220 : vector<2x2x128xf32>
    %222 = math.exp %221 : vector<2x2x128xf32>
    %cst_146 = arith.constant 1.000000e+00 : f32
    %223 = vector.broadcast %cst_146 : f32 to vector<2x2x128xf32>
    %224 = arith.addf %223, %222 : vector<2x2x128xf32>
    %225 = arith.divf %223, %224 : vector<2x2x128xf32>
    %226 = math.tanh %220 : vector<2x2x128xf32>
    %227 = vector.extract_strided_slice %225 {offsets = [0, 0, 0], sizes = [2, 2, 32], strides = [1, 1, 1]} : vector<2x2x128xf32> to vector<2x2x32xf32>
    %228 = vector.extract_strided_slice %225 {offsets = [0, 0, 32], sizes = [2, 2, 32], strides = [1, 1, 1]} : vector<2x2x128xf32> to vector<2x2x32xf32>
    %229 = vector.extract_strided_slice %226 {offsets = [0, 0, 64], sizes = [2, 2, 32], strides = [1, 1, 1]} : vector<2x2x128xf32> to vector<2x2x32xf32>
    %230 = vector.extract_strided_slice %225 {offsets = [0, 0, 96], sizes = [2, 2, 32], strides = [1, 1, 1]} : vector<2x2x128xf32> to vector<2x2x32xf32>
    %c0_147 = arith.constant 0 : index
    %c0_148 = arith.constant 0 : index
    %c0_149 = arith.constant 0 : index
    %231 = vector.load %arg7[%c0_147, %c0_148, %c0_149] : memref<2x2x32xf32, #tpu.memory_space<vmem>>, vector<2x2x32xf32>
    %232 = arith.mulf %228, %231 : vector<2x2x32xf32>
    %233 = arith.mulf %227, %229 : vector<2x2x32xf32>
    %234 = arith.addf %232, %233 : vector<2x2x32xf32>
    %235 = math.tanh %234 : vector<2x2x32xf32>
    %236 = arith.mulf %230, %235 : vector<2x2x32xf32>
    %c0_150 = arith.constant 0 : index
    %c0_151 = arith.constant 0 : index
    %c0_152 = arith.constant 0 : index
    %237 = vector.load %arg6[%c0_150, %c0_151, %c0_152] : memref<2x2x32xf32, #tpu.memory_space<vmem>>, vector<2x2x32xf32>
    tpu.vector_store %arg6[%c0_150, %c0_151, %c0_152], %236 {strides = array<i32>} : memref<2x2x32xf32, #tpu.memory_space<vmem>>, vector<2x2x32xf32>,
    %c0_153 = arith.constant 0 : index
    %c0_154 = arith.constant 0 : index
    %c0_155 = arith.constant 0 : index
    %238 = vector.load %arg7[%c0_153, %c0_154, %c0_155] : memref<2x2x32xf32, #tpu.memory_space<vmem>>, vector<2x2x32xf32>
    tpu.vector_store %arg7[%c0_153, %c0_154, %c0_155], %234 {strides = array<i32>} : memref<2x2x32xf32, #tpu.memory_space<vmem>>, vector<2x2x32xf32>,
    %239 = vector.extract_strided_slice %236 {offsets = [0, 0, 0], sizes = [1, 2, 32], strides = [1, 1, 1]} : vector<2x2x32xf32> to vector<1x2x32xf32>
    %240 = vector.shape_cast %239 : vector<1x2x32xf32> to vector<2x32xf32>
    %241 = vector.shape_cast %240 : vector<2x32xf32> to vector<1x2x32xf32>
    %242 = arith.index_cast %c6_i32 : i32 to index
    %c0_156 = arith.constant 0 : index
    %c0_157 = arith.constant 0 : index
    %243 = vector.load %arg3[%242, %c0_156, %c0_157] : memref<8x2x64xf32, #tpu.memory_space<vmem>>, vector<1x2x32xf32>
    tpu.vector_store %arg3[%242, %c0_156, %c0_157], %241 {strides = array<i32>} : memref<8x2x64xf32, #tpu.memory_space<vmem>>, vector<1x2x32xf32>,
    %244 = vector.extract_strided_slice %236 {offsets = [1, 0, 0], sizes = [1, 2, 32], strides = [1, 1, 1]} : vector<2x2x32xf32> to vector<1x2x32xf32>
    %245 = vector.shape_cast %244 : vector<1x2x32xf32> to vector<2x32xf32>
    %246 = vector.shape_cast %245 : vector<2x32xf32> to vector<1x2x32xf32>
    %c7_i32_158 = arith.constant 7 : i32
    %247 = arith.subi %c7_i32_158, %c6_i32 : i32
    %248 = arith.index_cast %247 : i32 to index
    %c0_159 = arith.constant 0 : index
    %c32_160 = arith.constant 32 : index
    %249 = vector.load %arg3[%248, %c0_159, %c32_160] : memref<8x2x64xf32, #tpu.memory_space<vmem>>, vector<1x2x32xf32>
    tpu.vector_store %arg3[%248, %c0_159, %c32_160], %246 {strides = array<i32>} : memref<8x2x64xf32, #tpu.memory_space<vmem>>, vector<1x2x32xf32>,
    %c7_i32_161 = arith.constant 7 : i32
    %250 = arith.index_cast %c7_i32_161 : i32 to index
    %c0_162 = arith.constant 0 : index
    %c0_163 = arith.constant 0 : index
    %c0_164 = arith.constant 0 : index
    %251 = vector.load %arg1[%250, %c0_162, %c0_163, %c0_164] : memref<8x2x2x128xf32, #tpu.memory_space<vmem>>, vector<1x2x2x128xf32>
    %252 = vector.shape_cast %251 : vector<1x2x2x128xf32> to vector<2x2x128xf32>
    %c0_165 = arith.constant 0 : index
    %c0_166 = arith.constant 0 : index
    %c0_167 = arith.constant 0 : index
    %253 = vector.load %arg6[%c0_165, %c0_166, %c0_167] : memref<2x2x32xf32, #tpu.memory_space<vmem>>, vector<2x2x32xf32>
    "tpu.trace_start"() <{level = 10 : i32, message = "dbh,dhg->dbg"}> : () -> ()
    %cst_168 = arith.constant dense<0.000000e+00> : vector<2x2x128xf32>
    %254 = tpu.matmul %253, %4, %cst_168 {dimension_numbers = #tpu.dot_dimension_numbers<[2], [1], [1], [2], [0, 0, 0, 1, 1, 2], [0], [0]>} : vector<2x2x32xf32>, vector<2x32x128xf32>, vector<2x2x128xf32> -> vector<2x2x128xf32>
    "tpu.trace_stop"() : () -> ()
    %255 = arith.addf %252, %254 : vector<2x2x128xf32>
    %256 = arith.negf %255 : vector<2x2x128xf32>
    %257 = math.exp %256 : vector<2x2x128xf32>
    %cst_169 = arith.constant 1.000000e+00 : f32
    %258 = vector.broadcast %cst_169 : f32 to vector<2x2x128xf32>
    %259 = arith.addf %258, %257 : vector<2x2x128xf32>
    %260 = arith.divf %258, %259 : vector<2x2x128xf32>
    %261 = math.tanh %255 : vector<2x2x128xf32>
    %262 = vector.extract_strided_slice %260 {offsets = [0, 0, 0], sizes = [2, 2, 32], strides = [1, 1, 1]} : vector<2x2x128xf32> to vector<2x2x32xf32>
    %263 = vector.extract_strided_slice %260 {offsets = [0, 0, 32], sizes = [2, 2, 32], strides = [1, 1, 1]} : vector<2x2x128xf32> to vector<2x2x32xf32>
    %264 = vector.extract_strided_slice %261 {offsets = [0, 0, 64], sizes = [2, 2, 32], strides = [1, 1, 1]} : vector<2x2x128xf32> to vector<2x2x32xf32>
    %265 = vector.extract_strided_slice %260 {offsets = [0, 0, 96], sizes = [2, 2, 32], strides = [1, 1, 1]} : vector<2x2x128xf32> to vector<2x2x32xf32>
    %c0_170 = arith.constant 0 : index
    %c0_171 = arith.constant 0 : index
    %c0_172 = arith.constant 0 : index
    %266 = vector.load %arg7[%c0_170, %c0_171, %c0_172] : memref<2x2x32xf32, #tpu.memory_space<vmem>>, vector<2x2x32xf32>
    %267 = arith.mulf %263, %266 : vector<2x2x32xf32>
    %268 = arith.mulf %262, %264 : vector<2x2x32xf32>
    %269 = arith.addf %267, %268 : vector<2x2x32xf32>
    %270 = math.tanh %269 : vector<2x2x32xf32>
    %271 = arith.mulf %265, %270 : vector<2x2x32xf32>
    %c0_173 = arith.constant 0 : index
    %c0_174 = arith.constant 0 : index
    %c0_175 = arith.constant 0 : index
    %272 = vector.load %arg6[%c0_173, %c0_174, %c0_175] : memref<2x2x32xf32, #tpu.memory_space<vmem>>, vector<2x2x32xf32>
    tpu.vector_store %arg6[%c0_173, %c0_174, %c0_175], %271 {strides = array<i32>} : memref<2x2x32xf32, #tpu.memory_space<vmem>>, vector<2x2x32xf32>,
    %c0_176 = arith.constant 0 : index
    %c0_177 = arith.constant 0 : index
    %c0_178 = arith.constant 0 : index
    %273 = vector.load %arg7[%c0_176, %c0_177, %c0_178] : memref<2x2x32xf32, #tpu.memory_space<vmem>>, vector<2x2x32xf32>
    tpu.vector_store %arg7[%c0_176, %c0_177, %c0_178], %269 {strides = array<i32>} : memref<2x2x32xf32, #tpu.memory_space<vmem>>, vector<2x2x32xf32>,
    %274 = vector.extract_strided_slice %271 {offsets = [0, 0, 0], sizes = [1, 2, 32], strides = [1, 1, 1]} : vector<2x2x32xf32> to vector<1x2x32xf32>
    %275 = vector.shape_cast %274 : vector<1x2x32xf32> to vector<2x32xf32>
    %276 = vector.shape_cast %275 : vector<2x32xf32> to vector<1x2x32xf32>
    %277 = arith.index_cast %c7_i32_161 : i32 to index
    %c0_179 = arith.constant 0 : index
    %c0_180 = arith.constant 0 : index
    %278 = vector.load %arg3[%277, %c0_179, %c0_180] : memref<8x2x64xf32, #tpu.memory_space<vmem>>, vector<1x2x32xf32>
    tpu.vector_store %arg3[%277, %c0_179, %c0_180], %276 {strides = array<i32>} : memref<8x2x64xf32, #tpu.memory_space<vmem>>, vector<1x2x32xf32>,
    %279 = vector.extract_strided_slice %271 {offsets = [1, 0, 0], sizes = [1, 2, 32], strides = [1, 1, 1]} : vector<2x2x32xf32> to vector<1x2x32xf32>
    %280 = vector.shape_cast %279 : vector<1x2x32xf32> to vector<2x32xf32>
    %281 = vector.shape_cast %280 : vector<2x32xf32> to vector<1x2x32xf32>
    %c7_i32_181 = arith.constant 7 : i32
    %282 = arith.subi %c7_i32_181, %c7_i32_161 : i32
    %283 = arith.index_cast %282 : i32 to index
    %c0_182 = arith.constant 0 : index
    %c32_183 = arith.constant 32 : index
    %284 = vector.load %arg3[%283, %c0_182, %c32_183] : memref<8x2x64xf32, #tpu.memory_space<vmem>>, vector<1x2x32xf32>
    tpu.vector_store %arg3[%283, %c0_182, %c32_183], %281 {strides = array<i32>} : memref<8x2x64xf32, #tpu.memory_space<vmem>>, vector<1x2x32xf32>,
    %c8_i32 = arith.constant 8 : i32
    %c0_184 = arith.constant 0 : index
    %c0_185 = arith.constant 0 : index
    %c0_186 = arith.constant 0 : index
    %285 = vector.load %arg6[%c0_184, %c0_185, %c0_186] : memref<2x2x32xf32, #tpu.memory_space<vmem>>, vector<2x2x32xf32>
    %c0_187 = arith.constant 0 : index
    %c0_188 = arith.constant 0 : index
    %c0_189 = arith.constant 0 : index
    %286 = vector.load %arg4[%c0_187, %c0_188, %c0_189] : memref<2x2x32xf32, #tpu.memory_space<vmem>>, vector<2x2x32xf32>
    tpu.vector_store %arg4[%c0_187, %c0_188, %c0_189], %285 {strides = array<i32>} : memref<2x2x32xf32, #tpu.memory_space<vmem>>, vector<2x2x32xf32>,
    %c0_190 = arith.constant 0 : index
    %c0_191 = arith.constant 0 : index
    %c0_192 = arith.constant 0 : index
    %287 = vector.load %arg7[%c0_190, %c0_191, %c0_192] : memref<2x2x32xf32, #tpu.memory_space<vmem>>, vector<2x2x32xf32>
    %c0_193 = arith.constant 0 : index
    %c0_194 = arith.constant 0 : index
    %c0_195 = arith.constant 0 : index
    %288 = vector.load %arg5[%c0_193, %c0_194, %c0_195] : memref<2x2x32xf32, #tpu.memory_space<vmem>>, vector<2x2x32xf32>
    tpu.vector_store %arg5[%c0_193, %c0_194, %c0_195], %287 {strides = array<i32>} : memref<2x2x32xf32, #tpu.memory_space<vmem>>, vector<2x2x32xf32>,
    return
  }
  func.func @transform_0(%arg0: i32) -> (i32, i32, i32, i32) {
    %c0_i32 = arith.constant 0 : i32
    %c0_i32_0 = arith.constant 0 : i32
    %c0_i32_1 = arith.constant 0 : i32
    %c0_i32_2 = arith.constant 0 : i32
    %c0_i32_3 = arith.constant 0 : i32
    return %c0_i32, %c0_i32_0, %c0_i32_1, %c0_i32_2 : i32, i32, i32, i32
  }
  func.func @transform_1(%arg0: i32) -> (i32, i32, i32) {
    %c0_i32 = arith.constant 0 : i32
    %c0_i32_0 = arith.constant 0 : i32
    %c0_i32_1 = arith.constant 0 : i32
    %c0_i32_2 = arith.constant 0 : i32
    return %c0_i32, %c0_i32_0, %c0_i32_1 : i32, i32, i32
  }
  func.func @transform_2(%arg0: i32) -> (i32, i32, i32) {
    %c0_i32 = arith.constant 0 : i32
    %c0_i32_0 = arith.constant 0 : i32
    %c0_i32_1 = arith.constant 0 : i32
    %c0_i32_2 = arith.constant 0 : i32
    return %c0_i32, %c0_i32_0, %c0_i32_1 : i32, i32, i32
  }
  func.func @transform_3(%arg0: i32) -> (i32, i32, i32) {
    %c0_i32 = arith.constant 0 : i32
    %c0_i32_0 = arith.constant 0 : i32
    %c0_i32_1 = arith.constant 0 : i32
    %c0_i32_2 = arith.constant 0 : i32
    return %c0_i32, %c0_i32_0, %c0_i32_1 : i32, i32, i32
  }
  func.func @transform_4(%arg0: i32) -> (i32, i32, i32) {
    %c0_i32 = arith.constant 0 : i32
    %c0_i32_0 = arith.constant 0 : i32
    %c0_i32_1 = arith.constant 0 : i32
    %c0_i32_2 = arith.constant 0 : i32
    return %c0_i32, %c0_i32_0, %c0_i32_1 : i32, i32, i32
  }
}

</mosaic_0001>

<llo_original>
// kernel: tpu_custom_call.1
$region0: #{tpu_custom_call.1}
  #allocation0 [shape = 'u32[]', space=smem, size = 0x4, offset = 0x4, fixed_abs, tag = 'smem constant byte address 0x4 - core index']
  #allocation1 [shape = 'u32[144,128]{1,0:T(1,128)}', space=vmem, size = 0x12000, scoped, tag = 'internal scratch']
  #allocation2 [shape = 'f32[2,2,32]{2,1,0:T(2,128)}', space=vmem, size = 0x800, scoped, tag = 'scratch operand']
  #allocation3 [shape = 'f32[2,2,32]{2,1,0:T(2,128)}', space=vmem, size = 0x800, scoped, tag = 'scratch operand']
  %s0 = inlined_call_operand.hbm [shape: f32[8,2,2,128], index: 0, kind: input, shape index: {}]
  %s1 = inlined_call_operand.hbm [shape: f32[2,32,128], index: 1, kind: input, shape index: {}]
  %s2 = inlined_call_operand.hbm [shape: f32[8,2,64], index: 2, kind: output, shape index: {0}]
  %s3 = inlined_call_operand.hbm [shape: f32[2,2,32], index: 3, kind: output, shape index: {1}]
  %s4 = inlined_call_operand.hbm [shape: f32[2,2,32], index: 4, kind: output, shape index: {2}]
  %5 = xla_tuple %s2, %s3, %s4
  %s6 = sld [smem:[#allocation0]]
  $region42: #{tpu_custom_call.1} parent=0
    _
  %s8 = ssub.s32 1, %s6
  %s9 = scalar_select 0, %s8, %s6
  $region1: #{tpu_custom_call.1} parent=0
    #allocation4 [shape = 'u8[16384]{0}', space=vmem, size = 0x4000, scoped, tag = 'input window, operand 0, single buffered']
    #allocation5 [shape = 's32[1]{0}', space=sflag, size = 0x4, scoped, tag = 'scoped memory for tpu_custom_call.1']
    #allocation6 [shape = 's32[1]{0}', space=sflag, size = 0x4, scoped, tag = 'scoped memory for tpu_custom_call.1']
    #allocation7 [shape = 'u8[32768]{0}', space=vmem, size = 0x8000, scoped, tag = 'input window, operand 1, single buffered']
    #allocation8 [shape = 's32[1]{0}', space=sflag, size = 0x4, scoped, tag = 'scoped memory for tpu_custom_call.1']
    #allocation9 [shape = 'u8[8192]{0}', space=vmem, size = 0x2000, scoped, tag = 'output window, operand 0, single buffered']
    #allocation10 [shape = 'u8[2048]{0}', space=vmem, size = 0x800, scoped, tag = 'output window, operand 1, single buffered']
    #allocation11 [shape = 's32[1]{0}', space=sflag, size = 0x4, scoped, tag = 'scoped memory for tpu_custom_call.1']
    #allocation12 [shape = 'u8[2048]{0}', space=vmem, size = 0x800, scoped, tag = 'output window, operand 2, single buffered']
    %10 = vsyncpa [#allocation5], 0
    %11 = vsyncpa [#allocation8], 0
    %12 = vsyncpa [#allocation6], 0
    %13 = vsyncpa [#allocation11], 0
    // Predicated region
    $region2: #{tpu_custom_call.1} parent=1 // pred_check
      _
    $region3: #{tpu_custom_call.1} parent=1 // pred_check_branch
      %15 = sbr.rel (0) target = $region5
    $region4: #{tpu_custom_call.1} parent=1 // pred_region
      %s17 = ssub.s32 512, 512
      %18 = vsyncadd [#allocation5], %s17
      %s19 = sshll.u32 [#allocation4], 4
      %s20 = int_to_ptr.vmem [resolvable:$true] %s19
      %25 = dma.hbm_to_vmem [thread:$0]  %s0, 512, %s20, [#allocation5], 32, 32, 2
    $region5: #{tpu_custom_call.1} parent=1 // pred_fallthru
      _
    // Predicated region
    $region6: #{tpu_custom_call.1} parent=1 // pred_check
      _
    $region7: #{tpu_custom_call.1} parent=1 // pred_check_branch
      %27 = sbr.rel (0) target = $region9
    $region8: #{tpu_custom_call.1} parent=1 // pred_region
      %s29 = ssub.s32 1024, 1024
      %30 = vsyncadd [#allocation8], %s29
      %s31 = sshll.u32 [#allocation7], 4
      %s32 = int_to_ptr.vmem [resolvable:$true] %s31
      %37 = dma.hbm_to_vmem [thread:$0]  %s1, 1024, %s32, [#allocation8], 128, 128, 8
    $region9: #{tpu_custom_call.1} parent=1 // pred_fallthru
      _
    // Predicated region
    $region10: #{tpu_custom_call.1} parent=1 // pred_check
      _
    $region11: #{tpu_custom_call.1} parent=1 // pred_check_branch
      %39 = sbr.rel (0) target = $region13
    $region12: #{tpu_custom_call.1} parent=1 // pred_region
      %40 = dma.done [#allocation5], 512
    $region13: #{tpu_custom_call.1} parent=1 // pred_fallthru
      _
    // Predicated region
    $region14: #{tpu_custom_call.1} parent=1 // pred_check
      _
    $region15: #{tpu_custom_call.1} parent=1 // pred_check_branch
      %42 = sbr.rel (0) target = $region17
    $region16: #{tpu_custom_call.1} parent=1 // pred_region
      %43 = dma.done [#allocation8], 1024
    $region17: #{tpu_custom_call.1} parent=1 // pred_fallthru
      _
    %vm44 = vcmask 254976
    %45 = vst.msk [vmem:[#allocation2] sm:$0x3] %vm44, 0.0
    %46 = vst.msk [vmem:[#allocation2 + $0x2] sm:$0x3] %vm44, 0.0
    %47 = vst.msk [vmem:[#allocation3] sm:$0x3] %vm44, 0.0
    %48 = vst.msk [vmem:[#allocation3 + $0x2] sm:$0x3] %vm44, 0.0
    %v49 = vld [vmem:[#allocation7] sm:$0xff]
    %v50 = vld [vmem:[#allocation7 + $0x8] sm:$0xff]
    %v51 = vld [vmem:[#allocation7 + $0x10] sm:$0xff]
    %v52 = vld [vmem:[#allocation7 + $0x18] sm:$0xff]
    %v53 = vld [vmem:[#allocation7 + $0x20] sm:$0xff]
    %v54 = vld [vmem:[#allocation7 + $0x28] sm:$0xff]
    %v55 = vld [vmem:[#allocation7 + $0x30] sm:$0xff]
    %v56 = vld [vmem:[#allocation7 + $0x38] sm:$0xff]
    %v57 = vld [vmem:[#allocation4] sm:$0x3]
    %v58 = vld [vmem:[#allocation4 + $0x2] sm:$0x3]
    %v59 = vld [vmem:[#allocation2] sm:$0x3]
    %v60 = vld [vmem:[#allocation2 + $0x2] sm:$0x3]
    %vm61 = vcmask 261120
    %v63 = vsel %vm61, %v59, 0
    %65 = vmatprep.subr.mxu0 0.0
    %66 = vmatpush1.msra.mxu0 %v49
    %67 = vmatprep.subr.mxu0 0.0
    %68 = vmatpush1.msra.mxu0 %v50
    %69 = vmatprep.subr.mxu0 0.0
    %70 = vmatpush1.msra.mxu0 %v51
    %71 = vmatprep.subr.mxu0 0.0
    %72 = vmatpush1.msra.mxu0 %v52
    %73 = vmatprep.subr.mxu0 0.0
    %74 = vmatpush1.msra.mxu0 0.0
    %75 = vmatprep.subr.mxu0 0.0
    %76 = vmatpush1.msra.mxu0 0.0
    %77 = vmatprep.subr.mxu0 0.0
    %78 = vmatpush1.msra.mxu0 0.0
    %79 = vmatprep.subr.mxu0 0.0
    %80 = vmatpush1.msra.mxu0 0.0
    %81 = vmatprep.subr.mxu0 0.0
    %82 = vmatpush1.msra.mxu0 0.0
    %83 = vmatprep.subr.mxu0 0.0
    %84 = vmatpush1.msra.mxu0 0.0
    %85 = vmatprep.subr.mxu0 0.0
    %86 = vmatpush1.msra.mxu0 0.0
    %87 = vmatprep.subr.mxu0 0.0
    %88 = vmatpush1.msra.mxu0 0.0
    %89 = vmatprep.subr.mxu0 0.0
    %90 = vmatpush1.msra.mxu0 0.0
    %91 = vmatprep.subr.mxu0 0.0
    %92 = vmatpush1.msra.mxu0 0.0
    %93 = vmatprep.subr.mxu0 0.0
    %94 = vmatpush1.msra.mxu0 0.0
    %95 = vmatprep.subr.mxu0 0.0
    %96 = vmatpush1.msra.mxu0 0.0
    %97 = vmatprep.subr.mxu0 0.0
    %98 = vmatpush1.msra.mxu0 0.0
    %99 = vmatprep.subr.mxu0 0.0
    %100 = vmatpush1.msra.mxu0 0.0
    %101 = vmatprep.subr.mxu0 0.0
    %102 = vmatpush1.msra.mxu0 0.0
    %103 = vmatprep.subr.mxu0 0.0
    %104 = vmatpush1.msra.mxu0 0.0
    %105 = vmatprep.subr.mxu0 0.0
    %106 = vmatpush1.msra.mxu0 0.0
    %107 = vmatprep.subr.mxu0 0.0
    %108 = vmatpush1.msra.mxu0 0.0
    %109 = vmatprep.subr.mxu0 0.0
    %110 = vmatpush1.msra.mxu0 0.0
    %111 = vmatprep.subr.mxu0 0.0
    %112 = vmatpush1.msra.mxu0 0.0
    %113 = vmatprep.subr.mxu0 0.0
    %114 = vmatpush1.msra.mxu0 0.0
    %115 = vmatprep.subr.mxu0 0.0
    %116 = vmatpush1.msra.mxu0 0.0
    %117 = vmatprep.subr.mxu0 0.0
    %118 = vmatpush1.msra.mxu0 0.0
    %119 = vmatprep.subr.mxu0 0.0
    %120 = vmatpush1.msra.mxu0 0.0
    %121 = vmatprep.subr.mxu0 0.0
    %122 = vmatpush1.msra.mxu0 0.0
    %123 = vmatprep.subr.mxu0 0.0
    %124 = vmatpush1.msra.mxu0 0.0
    %125 = vmatprep.subr.mxu0 0.0
    %126 = vmatpush1.msra.mxu0 0.0
    %127 = vmatprep.subr.mxu0 0.0
    %128 = vmatpush1.msra.mxu0 0.0
    %129 = vmatprep.mubr.f32.mxu0 0.0
    %130 = vmatmul.mubr.f32.gmra.mrb[0].mxu0 %v63
    %v131 = vpop.f32.mrb[0].mxu0
    %v132 = vadd.f32 0.0, %v131
    %v133 = vpop.f32.mrb[0].mxu0
    %134 = vdwg.mxu0
    %v136 = vsel %vm61, %v60, 0
    %138 = vmatprep.subr.mxu0 0.0
    %139 = vmatpush1.msra.mxu0 %v53
    %140 = vmatprep.subr.mxu0 0.0
    %141 = vmatpush1.msra.mxu0 %v54
    %142 = vmatprep.subr.mxu0 0.0
    %143 = vmatpush1.msra.mxu0 %v55
    %144 = vmatprep.subr.mxu0 0.0
    %145 = vmatpush1.msra.mxu0 %v56
    %146 = vmatprep.subr.mxu0 0.0
    %147 = vmatpush1.msra.mxu0 0.0
    %148 = vmatprep.subr.mxu0 0.0
    %149 = vmatpush1.msra.mxu0 0.0
    %150 = vmatprep.subr.mxu0 0.0
    %151 = vmatpush1.msra.mxu0 0.0
    %152 = vmatprep.subr.mxu0 0.0
    %153 = vmatpush1.msra.mxu0 0.0
    %154 = vmatprep.subr.mxu0 0.0
    %155 = vmatpush1.msra.mxu0 0.0
    %156 = vmatprep.subr.mxu0 0.0
    %157 = vmatpush1.msra.mxu0 0.0
    %158 = vmatprep.subr.mxu0 0.0
    %159 = vmatpush1.msra.mxu0 0.0
    %160 = vmatprep.subr.mxu0 0.0
    %161 = vmatpush1.msra.mxu0 0.0
    %162 = vmatprep.subr.mxu0 0.0
    %163 = vmatpush1.msra.mxu0 0.0
    %164 = vmatprep.subr.mxu0 0.0
    %165 = vmatpush1.msra.mxu0 0.0
    %166 = vmatprep.subr.mxu0 0.0
    %167 = vmatpush1.msra.mxu0 0.0
    %168 = vmatprep.subr.mxu0 0.0
    %169 = vmatpush1.msra.mxu0 0.0
    %170 = vmatprep.subr.mxu0 0.0
    %171 = vmatpush1.msra.mxu0 0.0
    %172 = vmatprep.subr.mxu0 0.0
    %173 = vmatpush1.msra.mxu0 0.0
    %174 = vmatprep.subr.mxu0 0.0
    %175 = vmatpush1.msra.mxu0 0.0
    %176 = vmatprep.subr.mxu0 0.0
    %177 = vmatpush1.msra.mxu0 0.0
    %178 = vmatprep.subr.mxu0 0.0
    %179 = vmatpush1.msra.mxu0 0.0
    %180 = vmatprep.subr.mxu0 0.0
    %181 = vmatpush1.msra.mxu0 0.0
    %182 = vmatprep.subr.mxu0 0.0
    %183 = vmatpush1.msra.mxu0 0.0
    %184 = vmatprep.subr.mxu0 0.0
    %185 = vmatpush1.msra.mxu0 0.0
    %186 = vmatprep.subr.mxu0 0.0
    %187 = vmatpush1.msra.mxu0 0.0
    %188 = vmatprep.subr.mxu0 0.0
    %189 = vmatpush1.msra.mxu0 0.0
    %190 = vmatprep.subr.mxu0 0.0
    %191 = vmatpush1.msra.mxu0 0.0
    %192 = vmatprep.subr.mxu0 0.0
    %193 = vmatpush1.msra.mxu0 0.0
    %194 = vmatprep.subr.mxu0 0.0
    %195 = vmatpush1.msra.mxu0 0.0
    %196 = vmatprep.subr.mxu0 0.0
    %197 = vmatpush1.msra.mxu0 0.0
    %198 = vmatprep.subr.mxu0 0.0
    %199 = vmatpush1.msra.mxu0 0.0
    %200 = vmatprep.subr.mxu0 0.0
    %201 = vmatpush1.msra.mxu0 0.0
    %202 = vmatprep.mubr.f32.mxu0 0.0
    %203 = vmatmul.mubr.f32.gmra.mrb[0].mxu0 %v136
    %v204 = vpop.f32.mrb[0].mxu0
    %v205 = vadd.f32 0.0, %v204
    %v206 = vpop.f32.mrb[0].mxu0
    %207 = vdwg.mxu0
    %v208 = vadd.f32 %v57, %v132
    %v209 = vadd.f32 %v58, %v205
    %v210 = vxor.u32 %v208, 2147483648
    %v211 = vxor.u32 %v209, 2147483648
    %v212 = vmul.f32 %v210, 1.442695
    %v213 = vpow.pop %v212
    %v214 = vmul.f32 %v211, 1.442695
    %v215 = vpow.pop %v214
    %v216 = vadd.f32 %v213, 1.0
    %v217 = vadd.f32 %v215, 1.0
    %v218 = vrcp.pop %v216
    %v219 = vmul.f32 1.0, %v218
    %v220 = vrcp.pop %v217
    %v221 = vmul.f32 1.0, %v220
    %v222 = vtanh.pop %v208
    %v223 = vtanh.pop %v209
    %v224 = vld [vmem:[#allocation3] sm:$0x3]
    %v225 = vld [vmem:[#allocation3 + $0x2] sm:$0x3]
    %228 = vrot.lane.b32.xlu0 %v224, 32
    %v229 = vpop.permute.xlu0 %228
    %230 = vrot.lane.b32.xlu0 %v225, 32
    %v231 = vpop.permute.xlu0 %230
    %v234 = vmul.f32 %v219, %v229
    %v235 = vmul.f32 %v221, %v231
    %238 = vrot.lane.b32.xlu0 %v222, 64
    %v239 = vpop.permute.xlu0 %238
    %240 = vrot.lane.b32.xlu0 %v223, 64
    %v241 = vpop.permute.xlu0 %240
    %v244 = vmul.f32 %v219, %v239
    %v245 = vmul.f32 %v221, %v241
    %248 = vrot.lane.b32.xlu0 %v244, 32
    %v249 = vpop.permute.xlu0 %248
    %250 = vrot.lane.b32.xlu0 %v245, 32
    %v251 = vpop.permute.xlu0 %250
    %v254 = vadd.f32 %v234, %v249
    %v255 = vadd.f32 %v235, %v251
    %v256 = vtanh.pop %v254
    %v257 = vtanh.pop %v255
    %260 = vrot.lane.b32.xlu0 %v256, 64
    %v261 = vpop.permute.xlu0 %260
    %262 = vrot.lane.b32.xlu0 %v257, 64
    %v263 = vpop.permute.xlu0 %262
    %v266 = vmul.f32 %v219, %v261
    %v267 = vmul.f32 %v221, %v263
    %270 = vrot.lane.b32.xlu0 %v266, 32
    %v271 = vpop.permute.xlu0 %270
    %272 = vrot.lane.b32.xlu0 %v267, 32
    %v273 = vpop.permute.xlu0 %272
    %276 = vst.msk [vmem:[#allocation2] sm:$0x3] %vm44, %v271
    %277 = vst.msk [vmem:[#allocation2 + $0x2] sm:$0x3] %vm44, %v273
    %280 = vrot.lane.b32.xlu0 %v254, 96
    %v281 = vpop.permute.xlu0 %280
    %282 = vrot.lane.b32.xlu0 %v255, 96
    %v283 = vpop.permute.xlu0 %282
    %286 = vst.msk [vmem:[#allocation3] sm:$0x3] %vm44, %v281
    %287 = vst.msk [vmem:[#allocation3 + $0x2] sm:$0x3] %vm44, %v283
    %288 = vst.msk [vmem:[#allocation9] sm:$0x3] %vm44, %v271
    %289 = vrot.lane.b32.xlu0 %v267, 64
    %v290 = vpop.permute.xlu0 %289
    %s292 = scalar_lea.vmem [#allocation9], 14
    %vm293 = vcmask 517376
    %294 = vst.msk [vmem:[%s292] sm:$0x3] %vm293, %v290
    %s295 = scalar_lea.vmem [#allocation4], 4
    %v296 = vld [vmem:[%s295] sm:$0x3]
    %v297 = vld [vmem:[%s295 + $0x2] sm:$0x3]
    %v298 = vld [vmem:[#allocation2] sm:$0x3]
    %v299 = vld [vmem:[#allocation2 + $0x2] sm:$0x3]
    %v301 = vsel %vm61, %v298, 0
    %303 = vmatprep.subr.mxu0 0.0
    %304 = vmatpush1.msra.mxu0 %v49
    %305 = vmatprep.subr.mxu0 0.0
    %306 = vmatpush1.msra.mxu0 %v50
    %307 = vmatprep.subr.mxu0 0.0
    %308 = vmatpush1.msra.mxu0 %v51
    %309 = vmatprep.subr.mxu0 0.0
    %310 = vmatpush1.msra.mxu0 %v52
    %311 = vmatprep.subr.mxu0 0.0
    %312 = vmatpush1.msra.mxu0 0.0
    %313 = vmatprep.subr.mxu0 0.0
    %314 = vmatpush1.msra.mxu0 0.0
    %315 = vmatprep.subr.mxu0 0.0
    %316 = vmatpush1.msra.mxu0 0.0
    %317 = vmatprep.subr.mxu0 0.0
    %318 = vmatpush1.msra.mxu0 0.0
    %319 = vmatprep.subr.mxu0 0.0
    %320 = vmatpush1.msra.mxu0 0.0
    %321 = vmatprep.subr.mxu0 0.0
    %322 = vmatpush1.msra.mxu0 0.0
    %323 = vmatprep.subr.mxu0 0.0
    %324 = vmatpush1.msra.mxu0 0.0
    %325 = vmatprep.subr.mxu0 0.0
    %326 = vmatpush1.msra.mxu0 0.0
    %327 = vmatprep.subr.mxu0 0.0
    %328 = vmatpush1.msra.mxu0 0.0
    %329 = vmatprep.subr.mxu0 0.0
    %330 = vmatpush1.msra.mxu0 0.0
    %331 = vmatprep.subr.mxu0 0.0
    %332 = vmatpush1.msra.mxu0 0.0
    %333 = vmatprep.subr.mxu0 0.0
    %334 = vmatpush1.msra.mxu0 0.0
    %335 = vmatprep.subr.mxu0 0.0
    %336 = vmatpush1.msra.mxu0 0.0
    %337 = vmatprep.subr.mxu0 0.0
    %338 = vmatpush1.msra.mxu0 0.0
    %339 = vmatprep.subr.mxu0 0.0
    %340 = vmatpush1.msra.mxu0 0.0
    %341 = vmatprep.subr.mxu0 0.0
    %342 = vmatpush1.msra.mxu0 0.0
    %343 = vmatprep.subr.mxu0 0.0
    %344 = vmatpush1.msra.mxu0 0.0
    %345 = vmatprep.subr.mxu0 0.0
    %346 = vmatpush1.msra.mxu0 0.0
    %347 = vmatprep.subr.mxu0 0.0
    %348 = vmatpush1.msra.mxu0 0.0
    %349 = vmatprep.subr.mxu0 0.0
    %350 = vmatpush1.msra.mxu0 0.0
    %351 = vmatprep.subr.mxu0 0.0
    %352 = vmatpush1.msra.mxu0 0.0
    %353 = vmatprep.subr.mxu0 0.0
    %354 = vmatpush1.msra.mxu0 0.0
    %355 = vmatprep.subr.mxu0 0.0
    %356 = vmatpush1.msra.mxu0 0.0
    %357 = vmatprep.subr.mxu0 0.0
    %358 = vmatpush1.msra.mxu0 0.0
    %359 = vmatprep.subr.mxu0 0.0
    %360 = vmatpush1.msra.mxu0 0.0
    %361 = vmatprep.subr.mxu0 0.0
    %362 = vmatpush1.msra.mxu0 0.0
    %363 = vmatprep.subr.mxu0 0.0
    %364 = vmatpush1.msra.mxu0 0.0
    %365 = vmatprep.subr.mxu0 0.0
    %366 = vmatpush1.msra.mxu0 0.0
    %367 = vmatprep.mubr.f32.mxu0 0.0
    %368 = vmatmul.mubr.f32.gmra.mrb[0].mxu0 %v301
    %v369 = vpop.f32.mrb[0].mxu0
    %v370 = vadd.f32 0.0, %v369
    %v371 = vpop.f32.mrb[0].mxu0
    %372 = vdwg.mxu0
    %v374 = vsel %vm61, %v299, 0
    %376 = vmatprep.subr.mxu0 0.0
    %377 = vmatpush1.msra.mxu0 %v53
    %378 = vmatprep.subr.mxu0 0.0
    %379 = vmatpush1.msra.mxu0 %v54
    %380 = vmatprep.subr.mxu0 0.0
    %381 = vmatpush1.msra.mxu0 %v55
    %382 = vmatprep.subr.mxu0 0.0
    %383 = vmatpush1.msra.mxu0 %v56
    %384 = vmatprep.subr.mxu0 0.0
    %385 = vmatpush1.msra.mxu0 0.0
    %386 = vmatprep.subr.mxu0 0.0
    %387 = vmatpush1.msra.mxu0 0.0
    %388 = vmatprep.subr.mxu0 0.0
    %389 = vmatpush1.msra.mxu0 0.0
    %390 = vmatprep.subr.mxu0 0.0
    %391 = vmatpush1.msra.mxu0 0.0
    %392 = vmatprep.subr.mxu0 0.0
    %393 = vmatpush1.msra.mxu0 0.0
    %394 = vmatprep.subr.mxu0 0.0
    %395 = vmatpush1.msra.mxu0 0.0
    %396 = vmatprep.subr.mxu0 0.0
    %397 = vmatpush1.msra.mxu0 0.0
    %398 = vmatprep.subr.mxu0 0.0
    %399 = vmatpush1.msra.mxu0 0.0
    %400 = vmatprep.subr.mxu0 0.0
    %401 = vmatpush1.msra.mxu0 0.0
    %402 = vmatprep.subr.mxu0 0.0
    %403 = vmatpush1.msra.mxu0 0.0
    %404 = vmatprep.subr.mxu0 0.0
    %405 = vmatpush1.msra.mxu0 0.0
    %406 = vmatprep.subr.mxu0 0.0
    %407 = vmatpush1.msra.mxu0 0.0
    %408 = vmatprep.subr.mxu0 0.0
    %409 = vmatpush1.msra.mxu0 0.0
    %410 = vmatprep.subr.mxu0 0.0
    %411 = vmatpush1.msra.mxu0 0.0
    %412 = vmatprep.subr.mxu0 0.0
    %413 = vmatpush1.msra.mxu0 0.0
    %414 = vmatprep.subr.mxu0 0.0
    %415 = vmatpush1.msra.mxu0 0.0
    %416 = vmatprep.subr.mxu0 0.0
    %417 = vmatpush1.msra.mxu0 0.0
    %418 = vmatprep.subr.mxu0 0.0
    %419 = vmatpush1.msra.mxu0 0.0
    %420 = vmatprep.subr.mxu0 0.0
    %421 = vmatpush1.msra.mxu0 0.0
    %422 = vmatprep.subr.mxu0 0.0
    %423 = vmatpush1.msra.mxu0 0.0
    %424 = vmatprep.subr.mxu0 0.0
    %425 = vmatpush1.msra.mxu0 0.0
    %426 = vmatprep.subr.mxu0 0.0
    %427 = vmatpush1.msra.mxu0 0.0
    %428 = vmatprep.subr.mxu0 0.0
    %429 = vmatpush1.msra.mxu0 0.0
    %430 = vmatprep.subr.mxu0 0.0
    %431 = vmatpush1.msra.mxu0 0.0
    %432 = vmatprep.subr.mxu0 0.0
    %433 = vmatpush1.msra.mxu0 0.0
    %434 = vmatprep.subr.mxu0 0.0
    %435 = vmatpush1.msra.mxu0 0.0
    %436 = vmatprep.subr.mxu0 0.0
    %437 = vmatpush1.msra.mxu0 0.0
    %438 = vmatprep.subr.mxu0 0.0
    %439 = vmatpush1.msra.mxu0 0.0
    %440 = vmatprep.mubr.f32.mxu0 0.0
    %441 = vmatmul.mubr.f32.gmra.mrb[0].mxu0 %v374
    %v442 = vpop.f32.mrb[0].mxu0
    %v443 = vadd.f32 0.0, %v442
    %v444 = vpop.f32.mrb[0].mxu0
    %445 = vdwg.mxu0
    %v446 = vadd.f32 %v296, %v370
    %v447 = vadd.f32 %v297, %v443
    %v448 = vxor.u32 %v446, 2147483648
    %v449 = vxor.u32 %v447, 2147483648
    %v450 = vmul.f32 %v448, 1.442695
    %v451 = vpow.pop %v450
    %v452 = vmul.f32 %v449, 1.442695
    %v453 = vpow.pop %v452
    %v454 = vadd.f32 %v451, 1.0
    %v455 = vadd.f32 %v453, 1.0
    %v456 = vrcp.pop %v454
    %v457 = vmul.f32 1.0, %v456
    %v458 = vrcp.pop %v455
    %v459 = vmul.f32 1.0, %v458
    %v460 = vtanh.pop %v446
    %v461 = vtanh.pop %v447
    %v462 = vld [vmem:[#allocation3] sm:$0x3]
    %v463 = vld [vmem:[#allocation3 + $0x2] sm:$0x3]
    %466 = vrot.lane.b32.xlu0 %v462, 32
    %v467 = vpop.permute.xlu0 %466
    %468 = vrot.lane.b32.xlu0 %v463, 32
    %v469 = vpop.permute.xlu0 %468
    %v472 = vmul.f32 %v457, %v467
    %v473 = vmul.f32 %v459, %v469
    %476 = vrot.lane.b32.xlu0 %v460, 64
    %v477 = vpop.permute.xlu0 %476
    %478 = vrot.lane.b32.xlu0 %v461, 64
    %v479 = vpop.permute.xlu0 %478
    %v482 = vmul.f32 %v457, %v477
    %v483 = vmul.f32 %v459, %v479
    %486 = vrot.lane.b32.xlu0 %v482, 32
    %v487 = vpop.permute.xlu0 %486
    %488 = vrot.lane.b32.xlu0 %v483, 32
    %v489 = vpop.permute.xlu0 %488
    %v492 = vadd.f32 %v472, %v487
    %v493 = vadd.f32 %v473, %v489
    %v494 = vtanh.pop %v492
    %v495 = vtanh.pop %v493
    %498 = vrot.lane.b32.xlu0 %v494, 64
    %v499 = vpop.permute.xlu0 %498
    %500 = vrot.lane.b32.xlu0 %v495, 64
    %v501 = vpop.permute.xlu0 %500
    %v504 = vmul.f32 %v457, %v499
    %v505 = vmul.f32 %v459, %v501
    %508 = vrot.lane.b32.xlu0 %v504, 32
    %v509 = vpop.permute.xlu0 %508
    %510 = vrot.lane.b32.xlu0 %v505, 32
    %v511 = vpop.permute.xlu0 %510
    %514 = vst.msk [vmem:[#allocation2] sm:$0x3] %vm44, %v509
    %515 = vst.msk [vmem:[#allocation2 + $0x2] sm:$0x3] %vm44, %v511
    %518 = vrot.lane.b32.xlu0 %v492, 96
    %v519 = vpop.permute.xlu0 %518
    %520 = vrot.lane.b32.xlu0 %v493, 96
    %v521 = vpop.permute.xlu0 %520
    %524 = vst.msk [vmem:[#allocation3] sm:$0x3] %vm44, %v519
    %525 = vst.msk [vmem:[#allocation3 + $0x2] sm:$0x3] %vm44, %v521
    %s526 = scalar_lea.vmem [#allocation9], 2
    %527 = vst.msk [vmem:[%s526] sm:$0x3] %vm44, %v509
    %528 = vrot.lane.b32.xlu0 %v505, 64
    %v529 = vpop.permute.xlu0 %528
    %s531 = scalar_lea.vmem [#allocation9], 12
    %532 = vst.msk [vmem:[%s531] sm:$0x3] %vm293, %v529
    %s533 = scalar_lea.vmem [#allocation4], 8
    %v534 = vld [vmem:[%s533] sm:$0x3]
    %v535 = vld [vmem:[%s533 + $0x2] sm:$0x3]
    %v536 = vld [vmem:[#allocation2] sm:$0x3]
    %v537 = vld [vmem:[#allocation2 + $0x2] sm:$0x3]
    %v539 = vsel %vm61, %v536, 0
    %541 = vmatprep.subr.mxu0 0.0
    %542 = vmatpush1.msra.mxu0 %v49
    %543 = vmatprep.subr.mxu0 0.0
    %544 = vmatpush1.msra.mxu0 %v50
    %545 = vmatprep.subr.mxu0 0.0
    %546 = vmatpush1.msra.mxu0 %v51
    %547 = vmatprep.subr.mxu0 0.0
    %548 = vmatpush1.msra.mxu0 %v52
    %549 = vmatprep.subr.mxu0 0.0
    %550 = vmatpush1.msra.mxu0 0.0
    %551 = vmatprep.subr.mxu0 0.0
    %552 = vmatpush1.msra.mxu0 0.0
    %553 = vmatprep.subr.mxu0 0.0
    %554 = vmatpush1.msra.mxu0 0.0
    %555 = vmatprep.subr.mxu0 0.0
    %556 = vmatpush1.msra.mxu0 0.0
    %557 = vmatprep.subr.mxu0 0.0
    %558 = vmatpush1.msra.mxu0 0.0
    %559 = vmatprep.subr.mxu0 0.0
    %560 = vmatpush1.msra.mxu0 0.0
    %561 = vmatprep.subr.mxu0 0.0
    %562 = vmatpush1.msra.mxu0 0.0
    %563 = vmatprep.subr.mxu0 0.0
    %564 = vmatpush1.msra.mxu0 0.0
    %565 = vmatprep.subr.mxu0 0.0
    %566 = vmatpush1.msra.mxu0 0.0
    %567 = vmatprep.subr.mxu0 0.0
    %568 = vmatpush1.msra.mxu0 0.0
    %569 = vmatprep.subr.mxu0 0.0
    %570 = vmatpush1.msra.mxu0 0.0
    %571 = vmatprep.subr.mxu0 0.0
    %572 = vmatpush1.msra.mxu0 0.0
    %573 = vmatprep.subr.mxu0 0.0
    %574 = vmatpush1.msra.mxu0 0.0
    %575 = vmatprep.subr.mxu0 0.0
    %576 = vmatpush1.msra.mxu0 0.0
    %577 = vmatprep.subr.mxu0 0.0
    %578 = vmatpush1.msra.mxu0 0.0
    %579 = vmatprep.subr.mxu0 0.0
    %580 = vmatpush1.msra.mxu0 0.0
    %581 = vmatprep.subr.mxu0 0.0
    %582 = vmatpush1.msra.mxu0 0.0
    %583 = vmatprep.subr.mxu0 0.0
    %584 = vmatpush1.msra.mxu0 0.0
    %585 = vmatprep.subr.mxu0 0.0
    %586 = vmatpush1.msra.mxu0 0.0
    %587 = vmatprep.subr.mxu0 0.0
    %588 = vmatpush1.msra.mxu0 0.0
    %589 = vmatprep.subr.mxu0 0.0
    %590 = vmatpush1.msra.mxu0 0.0
    %591 = vmatprep.subr.mxu0 0.0
    %592 = vmatpush1.msra.mxu0 0.0
    %593 = vmatprep.subr.mxu0 0.0
    %594 = vmatpush1.msra.mxu0 0.0
    %595 = vmatprep.subr.mxu0 0.0
    %596 = vmatpush1.msra.mxu0 0.0
    %597 = vmatprep.subr.mxu0 0.0
    %598 = vmatpush1.msra.mxu0 0.0
    %599 = vmatprep.subr.mxu0 0.0
    %600 = vmatpush1.msra.mxu0 0.0
    %601 = vmatprep.subr.mxu0 0.0
    %602 = vmatpush1.msra.mxu0 0.0
    %603 = vmatprep.subr.mxu0 0.0
    %604 = vmatpush1.msra.mxu0 0.0
    %605 = vmatprep.mubr.f32.mxu0 0.0
    %606 = vmatmul.mubr.f32.gmra.mrb[0].mxu0 %v539
    %v607 = vpop.f32.mrb[0].mxu0
    %v608 = vadd.f32 0.0, %v607
    %v609 = vpop.f32.mrb[0].mxu0
    %610 = vdwg.mxu0
    %v612 = vsel %vm61, %v537, 0
    %614 = vmatprep.subr.mxu0 0.0
    %615 = vmatpush1.msra.mxu0 %v53
    %616 = vmatprep.subr.mxu0 0.0
    %617 = vmatpush1.msra.mxu0 %v54
    %618 = vmatprep.subr.mxu0 0.0
    %619 = vmatpush1.msra.mxu0 %v55
    %620 = vmatprep.subr.mxu0 0.0
    %621 = vmatpush1.msra.mxu0 %v56
    %622 = vmatprep.subr.mxu0 0.0
    %623 = vmatpush1.msra.mxu0 0.0
    %624 = vmatprep.subr.mxu0 0.0
    %625 = vmatpush1.msra.mxu0 0.0
    %626 = vmatprep.subr.mxu0 0.0
    %627 = vmatpush1.msra.mxu0 0.0
    %628 = vmatprep.subr.mxu0 0.0
    %629 = vmatpush1.msra.mxu0 0.0
    %630 = vmatprep.subr.mxu0 0.0
    %631 = vmatpush1.msra.mxu0 0.0
    %632 = vmatprep.subr.mxu0 0.0
    %633 = vmatpush1.msra.mxu0 0.0
    %634 = vmatprep.subr.mxu0 0.0
    %635 = vmatpush1.msra.mxu0 0.0
    %636 = vmatprep.subr.mxu0 0.0
    %637 = vmatpush1.msra.mxu0 0.0
    %638 = vmatprep.subr.mxu0 0.0
    %639 = vmatpush1.msra.mxu0 0.0
    %640 = vmatprep.subr.mxu0 0.0
    %641 = vmatpush1.msra.mxu0 0.0
    %642 = vmatprep.subr.mxu0 0.0
    %643 = vmatpush1.msra.mxu0 0.0
    %644 = vmatprep.subr.mxu0 0.0
    %645 = vmatpush1.msra.mxu0 0.0
    %646 = vmatprep.subr.mxu0 0.0
    %647 = vmatpush1.msra.mxu0 0.0
    %648 = vmatprep.subr.mxu0 0.0
    %649 = vmatpush1.msra.mxu0 0.0
    %650 = vmatprep.subr.mxu0 0.0
    %651 = vmatpush1.msra.mxu0 0.0
    %652 = vmatprep.subr.mxu0 0.0
    %653 = vmatpush1.msra.mxu0 0.0
    %654 = vmatprep.subr.mxu0 0.0
    %655 = vmatpush1.msra.mxu0 0.0
    %656 = vmatprep.subr.mxu0 0.0
    %657 = vmatpush1.msra.mxu0 0.0
    %658 = vmatprep.subr.mxu0 0.0
    %659 = vmatpush1.msra.mxu0 0.0
    %660 = vmatprep.subr.mxu0 0.0
    %661 = vmatpush1.msra.mxu0 0.0
    %662 = vmatprep.subr.mxu0 0.0
    %663 = vmatpush1.msra.mxu0 0.0
    %664 = vmatprep.subr.mxu0 0.0
    %665 = vmatpush1.msra.mxu0 0.0
    %666 = vmatprep.subr.mxu0 0.0
    %667 = vmatpush1.msra.mxu0 0.0
    %668 = vmatprep.subr.mxu0 0.0
    %669 = vmatpush1.msra.mxu0 0.0
    %670 = vmatprep.subr.mxu0 0.0
    %671 = vmatpush1.msra.mxu0 0.0
    %672 = vmatprep.subr.mxu0 0.0
    %673 = vmatpush1.msra.mxu0 0.0
    %674 = vmatprep.subr.mxu0 0.0
    %675 = vmatpush1.msra.mxu0 0.0
    %676 = vmatprep.subr.mxu0 0.0
    %677 = vmatpush1.msra.mxu0 0.0
    %678 = vmatprep.mubr.f32.mxu0 0.0
    %679 = vmatmul.mubr.f32.gmra.mrb[0].mxu0 %v612
    %v680 = vpop.f32.mrb[0].mxu0
    %v681 = vadd.f32 0.0, %v680
    %v682 = vpop.f32.mrb[0].mxu0
    %683 = vdwg.mxu0
    %v684 = vadd.f32 %v534, %v608
    %v685 = vadd.f32 %v535, %v681
    %v686 = vxor.u32 %v684, 2147483648
    %v687 = vxor.u32 %v685, 2147483648
    %v688 = vmul.f32 %v686, 1.442695
    %v689 = vpow.pop %v688
    %v690 = vmul.f32 %v687, 1.442695
    %v691 = vpow.pop %v690
    %v692 = vadd.f32 %v689, 1.0
    %v693 = vadd.f32 %v691, 1.0
    %v694 = vrcp.pop %v692
    %v695 = vmul.f32 1.0, %v694
    %v696 = vrcp.pop %v693
    %v697 = vmul.f32 1.0, %v696
    %v698 = vtanh.pop %v684
    %v699 = vtanh.pop %v685
    %v700 = vld [vmem:[#allocation3] sm:$0x3]
    %v701 = vld [vmem:[#allocation3 + $0x2] sm:$0x3]
    %704 = vrot.lane.b32.xlu0 %v700, 32
    %v705 = vpop.permute.xlu0 %704
    %706 = vrot.lane.b32.xlu0 %v701, 32
    %v707 = vpop.permute.xlu0 %706
    %v710 = vmul.f32 %v695, %v705
    %v711 = vmul.f32 %v697, %v707
    %714 = vrot.lane.b32.xlu0 %v698, 64
    %v715 = vpop.permute.xlu0 %714
    %716 = vrot.lane.b32.xlu0 %v699, 64
    %v717 = vpop.permute.xlu0 %716
    %v720 = vmul.f32 %v695, %v715
    %v721 = vmul.f32 %v697, %v717
    %724 = vrot.lane.b32.xlu0 %v720, 32
    %v725 = vpop.permute.xlu0 %724
    %726 = vrot.lane.b32.xlu0 %v721, 32
    %v727 = vpop.permute.xlu0 %726
    %v730 = vadd.f32 %v710, %v725
    %v731 = vadd.f32 %v711, %v727
    %v732 = vtanh.pop %v730
    %v733 = vtanh.pop %v731
    %736 = vrot.lane.b32.xlu0 %v732, 64
    %v737 = vpop.permute.xlu0 %736
    %738 = vrot.lane.b32.xlu0 %v733, 64
    %v739 = vpop.permute.xlu0 %738
    %v742 = vmul.f32 %v695, %v737
    %v743 = vmul.f32 %v697, %v739
    %746 = vrot.lane.b32.xlu0 %v742, 32
    %v747 = vpop.permute.xlu0 %746
    %748 = vrot.lane.b32.xlu0 %v743, 32
    %v749 = vpop.permute.xlu0 %748
    %752 = vst.msk [vmem:[#allocation2] sm:$0x3] %vm44, %v747
    %753 = vst.msk [vmem:[#allocation2 + $0x2] sm:$0x3] %vm44, %v749
    %756 = vrot.lane.b32.xlu0 %v730, 96
    %v757 = vpop.permute.xlu0 %756
    %758 = vrot.lane.b32.xlu0 %v731, 96
    %v759 = vpop.permute.xlu0 %758
    %762 = vst.msk [vmem:[#allocation3] sm:$0x3] %vm44, %v757
    %763 = vst.msk [vmem:[#allocation3 + $0x2] sm:$0x3] %vm44, %v759
    %s764 = scalar_lea.vmem [#allocation9], 4
    %765 = vst.msk [vmem:[%s764] sm:$0x3] %vm44, %v747
    %766 = vrot.lane.b32.xlu0 %v743, 64
    %v767 = vpop.permute.xlu0 %766
    %s769 = scalar_lea.vmem [#allocation9], 10
    %770 = vst.msk [vmem:[%s769] sm:$0x3] %vm293, %v767
    %s771 = scalar_lea.vmem [#allocation4], 12
    %v772 = vld [vmem:[%s771] sm:$0x3]
    %v773 = vld [vmem:[%s771 + $0x2] sm:$0x3]
    %v774 = vld [vmem:[#allocation2] sm:$0x3]
    %v775 = vld [vmem:[#allocation2 + $0x2] sm:$0x3]
    %v777 = vsel %vm61, %v774, 0
    %779 = vmatprep.subr.mxu0 0.0
    %780 = vmatpush1.msra.mxu0 %v49
    %781 = vmatprep.subr.mxu0 0.0
    %782 = vmatpush1.msra.mxu0 %v50
    %783 = vmatprep.subr.mxu0 0.0
    %784 = vmatpush1.msra.mxu0 %v51
    %785 = vmatprep.subr.mxu0 0.0
    %786 = vmatpush1.msra.mxu0 %v52
    %787 = vmatprep.subr.mxu0 0.0
    %788 = vmatpush1.msra.mxu0 0.0
    %789 = vmatprep.subr.mxu0 0.0
    %790 = vmatpush1.msra.mxu0 0.0
    %791 = vmatprep.subr.mxu0 0.0
    %792 = vmatpush1.msra.mxu0 0.0
    %793 = vmatprep.subr.mxu0 0.0
    %794 = vmatpush1.msra.mxu0 0.0
    %795 = vmatprep.subr.mxu0 0.0
    %796 = vmatpush1.msra.mxu0 0.0
    %797 = vmatprep.subr.mxu0 0.0
    %798 = vmatpush1.msra.mxu0 0.0
    %799 = vmatprep.subr.mxu0 0.0
    %800 = vmatpush1.msra.mxu0 0.0
    %801 = vmatprep.subr.mxu0 0.0
    %802 = vmatpush1.msra.mxu0 0.0
    %803 = vmatprep.subr.mxu0 0.0
    %804 = vmatpush1.msra.mxu0 0.0
    %805 = vmatprep.subr.mxu0 0.0
    %806 = vmatpush1.msra.mxu0 0.0
    %807 = vmatprep.subr.mxu0 0.0
    %808 = vmatpush1.msra.mxu0 0.0
    %809 = vmatprep.subr.mxu0 0.0
    %810 = vmatpush1.msra.mxu0 0.0
    %811 = vmatprep.subr.mxu0 0.0
    %812 = vmatpush1.msra.mxu0 0.0
    %813 = vmatprep.subr.mxu0 0.0
    %814 = vmatpush1.msra.mxu0 0.0
    %815 = vmatprep.subr.mxu0 0.0
    %816 = vmatpush1.msra.mxu0 0.0
    %817 = vmatprep.subr.mxu0 0.0
    %818 = vmatpush1.msra.mxu0 0.0
    %819 = vmatprep.subr.mxu0 0.0
    %820 = vmatpush1.msra.mxu0 0.0
    %821 = vmatprep.subr.mxu0 0.0
    %822 = vmatpush1.msra.mxu0 0.0
    %823 = vmatprep.subr.mxu0 0.0
    %824 = vmatpush1.msra.mxu0 0.0
    %825 = vmatprep.subr.mxu0 0.0
    %826 = vmatpush1.msra.mxu0 0.0
    %827 = vmatprep.subr.mxu0 0.0
    %828 = vmatpush1.msra.mxu0 0.0
    %829 = vmatprep.subr.mxu0 0.0
    %830 = vmatpush1.msra.mxu0 0.0
    %831 = vmatprep.subr.mxu0 0.0
    %832 = vmatpush1.msra.mxu0 0.0
    %833 = vmatprep.subr.mxu0 0.0
    %834 = vmatpush1.msra.mxu0 0.0
    %835 = vmatprep.subr.mxu0 0.0
    %836 = vmatpush1.msra.mxu0 0.0
    %837 = vmatprep.subr.mxu0 0.0
    %838 = vmatpush1.msra.mxu0 0.0
    %839 = vmatprep.subr.mxu0 0.0
    %840 = vmatpush1.msra.mxu0 0.0
    %841 = vmatprep.subr.mxu0 0.0
    %842 = vmatpush1.msra.mxu0 0.0
    %843 = vmatprep.mubr.f32.mxu0 0.0
    %844 = vmatmul.mubr.f32.gmra.mrb[0].mxu0 %v777
    %v845 = vpop.f32.mrb[0].mxu0
    %v846 = vadd.f32 0.0, %v845
    %v847 = vpop.f32.mrb[0].mxu0
    %848 = vdwg.mxu0
    %v850 = vsel %vm61, %v775, 0
    %852 = vmatprep.subr.mxu0 0.0
    %853 = vmatpush1.msra.mxu0 %v53
    %854 = vmatprep.subr.mxu0 0.0
    %855 = vmatpush1.msra.mxu0 %v54
    %856 = vmatprep.subr.mxu0 0.0
    %857 = vmatpush1.msra.mxu0 %v55
    %858 = vmatprep.subr.mxu0 0.0
    %859 = vmatpush1.msra.mxu0 %v56
    %860 = vmatprep.subr.mxu0 0.0
    %861 = vmatpush1.msra.mxu0 0.0
    %862 = vmatprep.subr.mxu0 0.0
    %863 = vmatpush1.msra.mxu0 0.0
    %864 = vmatprep.subr.mxu0 0.0
    %865 = vmatpush1.msra.mxu0 0.0
    %866 = vmatprep.subr.mxu0 0.0
    %867 = vmatpush1.msra.mxu0 0.0
    %868 = vmatprep.subr.mxu0 0.0
    %869 = vmatpush1.msra.mxu0 0.0
    %870 = vmatprep.subr.mxu0 0.0
    %871 = vmatpush1.msra.mxu0 0.0
    %872 = vmatprep.subr.mxu0 0.0
    %873 = vmatpush1.msra.mxu0 0.0
    %874 = vmatprep.subr.mxu0 0.0
    %875 = vmatpush1.msra.mxu0 0.0
    %876 = vmatprep.subr.mxu0 0.0
    %877 = vmatpush1.msra.mxu0 0.0
    %878 = vmatprep.subr.mxu0 0.0
    %879 = vmatpush1.msra.mxu0 0.0
    %880 = vmatprep.subr.mxu0 0.0
    %881 = vmatpush1.msra.mxu0 0.0
    %882 = vmatprep.subr.mxu0 0.0
    %883 = vmatpush1.msra.mxu0 0.0
    %884 = vmatprep.subr.mxu0 0.0
    %885 = vmatpush1.msra.mxu0 0.0
    %886 = vmatprep.subr.mxu0 0.0
    %887 = vmatpush1.msra.mxu0 0.0
    %888 = vmatprep.subr.mxu0 0.0
    %889 = vmatpush1.msra.mxu0 0.0
    %890 = vmatprep.subr.mxu0 0.0
    %891 = vmatpush1.msra.mxu0 0.0
    %892 = vmatprep.subr.mxu0 0.0
    %893 = vmatpush1.msra.mxu0 0.0
    %894 = vmatprep.subr.mxu0 0.0
    %895 = vmatpush1.msra.mxu0 0.0
    %896 = vmatprep.subr.mxu0 0.0
    %897 = vmatpush1.msra.mxu0 0.0
    %898 = vmatprep.subr.mxu0 0.0
    %899 = vmatpush1.msra.mxu0 0.0
    %900 = vmatprep.subr.mxu0 0.0
    %901 = vmatpush1.msra.mxu0 0.0
    %902 = vmatprep.subr.mxu0 0.0
    %903 = vmatpush1.msra.mxu0 0.0
    %904 = vmatprep.subr.mxu0 0.0
    %905 = vmatpush1.msra.mxu0 0.0
    %906 = vmatprep.subr.mxu0 0.0
    %907 = vmatpush1.msra.mxu0 0.0
    %908 = vmatprep.subr.mxu0 0.0
    %909 = vmatpush1.msra.mxu0 0.0
    %910 = vmatprep.subr.mxu0 0.0
    %911 = vmatpush1.msra.mxu0 0.0
    %912 = vmatprep.subr.mxu0 0.0
    %913 = vmatpush1.msra.mxu0 0.0
    %914 = vmatprep.subr.mxu0 0.0
    %915 = vmatpush1.msra.mxu0 0.0
    %916 = vmatprep.mubr.f32.mxu0 0.0
    %917 = vmatmul.mubr.f32.gmra.mrb[0].mxu0 %v850
    %v918 = vpop.f32.mrb[0].mxu0
    %v919 = vadd.f32 0.0, %v918
    %v920 = vpop.f32.mrb[0].mxu0
    %921 = vdwg.mxu0
    %v922 = vadd.f32 %v772, %v846
    %v923 = vadd.f32 %v773, %v919
    %v924 = vxor.u32 %v922, 2147483648
    %v925 = vxor.u32 %v923, 2147483648
    %v926 = vmul.f32 %v924, 1.442695
    %v927 = vpow.pop %v926
    %v928 = vmul.f32 %v925, 1.442695
    %v929 = vpow.pop %v928
    %v930 = vadd.f32 %v927, 1.0
    %v931 = vadd.f32 %v929, 1.0
    %v932 = vrcp.pop %v930
    %v933 = vmul.f32 1.0, %v932
    %v934 = vrcp.pop %v931
    %v935 = vmul.f32 1.0, %v934
    %v936 = vtanh.pop %v922
    %v937 = vtanh.pop %v923
    %v938 = vld [vmem:[#allocation3] sm:$0x3]
    %v939 = vld [vmem:[#allocation3 + $0x2] sm:$0x3]
    %942 = vrot.lane.b32.xlu0 %v938, 32
    %v943 = vpop.permute.xlu0 %942
    %944 = vrot.lane.b32.xlu0 %v939, 32
    %v945 = vpop.permute.xlu0 %944
    %v948 = vmul.f32 %v933, %v943
    %v949 = vmul.f32 %v935, %v945
    %952 = vrot.lane.b32.xlu0 %v936, 64
    %v953 = vpop.permute.xlu0 %952
    %954 = vrot.lane.b32.xlu0 %v937, 64
    %v955 = vpop.permute.xlu0 %954
    %v958 = vmul.f32 %v933, %v953
    %v959 = vmul.f32 %v935, %v955
    %962 = vrot.lane.b32.xlu0 %v958, 32
    %v963 = vpop.permute.xlu0 %962
    %964 = vrot.lane.b32.xlu0 %v959, 32
    %v965 = vpop.permute.xlu0 %964
    %v968 = vadd.f32 %v948, %v963
    %v969 = vadd.f32 %v949, %v965
    %v970 = vtanh.pop %v968
    %v971 = vtanh.pop %v969
    %974 = vrot.lane.b32.xlu0 %v970, 64
    %v975 = vpop.permute.xlu0 %974
    %976 = vrot.lane.b32.xlu0 %v971, 64
    %v977 = vpop.permute.xlu0 %976
    %v980 = vmul.f32 %v933, %v975
    %v981 = vmul.f32 %v935, %v977
    %984 = vrot.lane.b32.xlu0 %v980, 32
    %v985 = vpop.permute.xlu0 %984
    %986 = vrot.lane.b32.xlu0 %v981, 32
    %v987 = vpop.permute.xlu0 %986
    %990 = vst.msk [vmem:[#allocation2] sm:$0x3] %vm44, %v985
    %991 = vst.msk [vmem:[#allocation2 + $0x2] sm:$0x3] %vm44, %v987
    %994 = vrot.lane.b32.xlu0 %v968, 96
    %v995 = vpop.permute.xlu0 %994
    %996 = vrot.lane.b32.xlu0 %v969, 96
    %v997 = vpop.permute.xlu0 %996
    %1000 = vst.msk [vmem:[#allocation3] sm:$0x3] %vm44, %v995
    %1001 = vst.msk [vmem:[#allocation3 + $0x2] sm:$0x3] %vm44, %v997
    %s1002 = scalar_lea.vmem [#allocation9], 6
    %1003 = vst.msk [vmem:[%s1002] sm:$0x3] %vm44, %v985
    %1004 = vrot.lane.b32.xlu0 %v981, 64
    %v1005 = vpop.permute.xlu0 %1004
    %s1007 = scalar_lea.vmem [#allocation9], 8
    %1008 = vst.msk [vmem:[%s1007] sm:$0x3] %vm293, %v1005
    %s1009 = scalar_lea.vmem [#allocation4], 16
    %v1010 = vld [vmem:[%s1009] sm:$0x3]
    %v1011 = vld [vmem:[%s1009 + $0x2] sm:$0x3]
    %v1012 = vld [vmem:[#allocation2] sm:$0x3]
    %v1013 = vld [vmem:[#allocation2 + $0x2] sm:$0x3]
    %v1015 = vsel %vm61, %v1012, 0
    %1017 = vmatprep.subr.mxu0 0.0
    %1018 = vmatpush1.msra.mxu0 %v49
    %1019 = vmatprep.subr.mxu0 0.0
    %1020 = vmatpush1.msra.mxu0 %v50
    %1021 = vmatprep.subr.mxu0 0.0
    %1022 = vmatpush1.msra.mxu0 %v51
    %1023 = vmatprep.subr.mxu0 0.0
    %1024 = vmatpush1.msra.mxu0 %v52
    %1025 = vmatprep.subr.mxu0 0.0
    %1026 = vmatpush1.msra.mxu0 0.0
    %1027 = vmatprep.subr.mxu0 0.0
    %1028 = vmatpush1.msra.mxu0 0.0
    %1029 = vmatprep.subr.mxu0 0.0
    %1030 = vmatpush1.msra.mxu0 0.0
    %1031 = vmatprep.subr.mxu0 0.0
    %1032 = vmatpush1.msra.mxu0 0.0
    %1033 = vmatprep.subr.mxu0 0.0
    %1034 = vmatpush1.msra.mxu0 0.0
    %1035 = vmatprep.subr.mxu0 0.0
    %1036 = vmatpush1.msra.mxu0 0.0
    %1037 = vmatprep.subr.mxu0 0.0
    %1038 = vmatpush1.msra.mxu0 0.0
    %1039 = vmatprep.subr.mxu0 0.0
    %1040 = vmatpush1.msra.mxu0 0.0
    %1041 = vmatprep.subr.mxu0 0.0
    %1042 = vmatpush1.msra.mxu0 0.0
    %1043 = vmatprep.subr.mxu0 0.0
    %1044 = vmatpush1.msra.mxu0 0.0
    %1045 = vmatprep.subr.mxu0 0.0
    %1046 = vmatpush1.msra.mxu0 0.0
    %1047 = vmatprep.subr.mxu0 0.0
    %1048 = vmatpush1.msra.mxu0 0.0
    %1049 = vmatprep.subr.mxu0 0.0
    %1050 = vmatpush1.msra.mxu0 0.0
    %1051 = vmatprep.subr.mxu0 0.0
    %1052 = vmatpush1.msra.mxu0 0.0
    %1053 = vmatprep.subr.mxu0 0.0
    %1054 = vmatpush1.msra.mxu0 0.0
    %1055 = vmatprep.subr.mxu0 0.0
    %1056 = vmatpush1.msra.mxu0 0.0
    %1057 = vmatprep.subr.mxu0 0.0
    %1058 = vmatpush1.msra.mxu0 0.0
    %1059 = vmatprep.subr.mxu0 0.0
    %1060 = vmatpush1.msra.mxu0 0.0
    %1061 = vmatprep.subr.mxu0 0.0
    %1062 = vmatpush1.msra.mxu0 0.0
    %1063 = vmatprep.subr.mxu0 0.0
    %1064 = vmatpush1.msra.mxu0 0.0
    %1065 = vmatprep.subr.mxu0 0.0
    %1066 = vmatpush1.msra.mxu0 0.0
    %1067 = vmatprep.subr.mxu0 0.0
    %1068 = vmatpush1.msra.mxu0 0.0
    %1069 = vmatprep.subr.mxu0 0.0
    %1070 = vmatpush1.msra.mxu0 0.0
    %1071 = vmatprep.subr.mxu0 0.0
    %1072 = vmatpush1.msra.mxu0 0.0
    %1073 = vmatprep.subr.mxu0 0.0
    %1074 = vmatpush1.msra.mxu0 0.0
    %1075 = vmatprep.subr.mxu0 0.0
    %1076 = vmatpush1.msra.mxu0 0.0
    %1077 = vmatprep.subr.mxu0 0.0
    %1078 = vmatpush1.msra.mxu0 0.0
    %1079 = vmatprep.subr.mxu0 0.0
    %1080 = vmatpush1.msra.mxu0 0.0
    %1081 = vmatprep.mubr.f32.mxu0 0.0
    %1082 = vmatmul.mubr.f32.gmra.mrb[0].mxu0 %v1015
    %v1083 = vpop.f32.mrb[0].mxu0
    %v1084 = vadd.f32 0.0, %v1083
    %v1085 = vpop.f32.mrb[0].mxu0
    %1086 = vdwg.mxu0
    %v1088 = vsel %vm61, %v1013, 0
    %1090 = vmatprep.subr.mxu0 0.0
    %1091 = vmatpush1.msra.mxu0 %v53
    %1092 = vmatprep.subr.mxu0 0.0
    %1093 = vmatpush1.msra.mxu0 %v54
    %1094 = vmatprep.subr.mxu0 0.0
    %1095 = vmatpush1.msra.mxu0 %v55
    %1096 = vmatprep.subr.mxu0 0.0
    %1097 = vmatpush1.msra.mxu0 %v56
    %1098 = vmatprep.subr.mxu0 0.0
    %1099 = vmatpush1.msra.mxu0 0.0
    %1100 = vmatprep.subr.mxu0 0.0
    %1101 = vmatpush1.msra.mxu0 0.0
    %1102 = vmatprep.subr.mxu0 0.0
    %1103 = vmatpush1.msra.mxu0 0.0
    %1104 = vmatprep.subr.mxu0 0.0
    %1105 = vmatpush1.msra.mxu0 0.0
    %1106 = vmatprep.subr.mxu0 0.0
    %1107 = vmatpush1.msra.mxu0 0.0
    %1108 = vmatprep.subr.mxu0 0.0
    %1109 = vmatpush1.msra.mxu0 0.0
    %1110 = vmatprep.subr.mxu0 0.0
    %1111 = vmatpush1.msra.mxu0 0.0
    %1112 = vmatprep.subr.mxu0 0.0
    %1113 = vmatpush1.msra.mxu0 0.0
    %1114 = vmatprep.subr.mxu0 0.0
    %1115 = vmatpush1.msra.mxu0 0.0
    %1116 = vmatprep.subr.mxu0 0.0
    %1117 = vmatpush1.msra.mxu0 0.0
    %1118 = vmatprep.subr.mxu0 0.0
    %1119 = vmatpush1.msra.mxu0 0.0
    %1120 = vmatprep.subr.mxu0 0.0
    %1121 = vmatpush1.msra.mxu0 0.0
    %1122 = vmatprep.subr.mxu0 0.0
    %1123 = vmatpush1.msra.mxu0 0.0
    %1124 = vmatprep.subr.mxu0 0.0
    %1125 = vmatpush1.msra.mxu0 0.0
    %1126 = vmatprep.subr.mxu0 0.0
    %1127 = vmatpush1.msra.mxu0 0.0
    %1128 = vmatprep.subr.mxu0 0.0
    %1129 = vmatpush1.msra.mxu0 0.0
    %1130 = vmatprep.subr.mxu0 0.0
    %1131 = vmatpush1.msra.mxu0 0.0
    %1132 = vmatprep.subr.mxu0 0.0
    %1133 = vmatpush1.msra.mxu0 0.0
    %1134 = vmatprep.subr.mxu0 0.0
    %1135 = vmatpush1.msra.mxu0 0.0
    %1136 = vmatprep.subr.mxu0 0.0
    %1137 = vmatpush1.msra.mxu0 0.0
    %1138 = vmatprep.subr.mxu0 0.0
    %1139 = vmatpush1.msra.mxu0 0.0
    %1140 = vmatprep.subr.mxu0 0.0
    %1141 = vmatpush1.msra.mxu0 0.0
    %1142 = vmatprep.subr.mxu0 0.0
    %1143 = vmatpush1.msra.mxu0 0.0
    %1144 = vmatprep.subr.mxu0 0.0
    %1145 = vmatpush1.msra.mxu0 0.0
    %1146 = vmatprep.subr.mxu0 0.0
    %1147 = vmatpush1.msra.mxu0 0.0
    %1148 = vmatprep.subr.mxu0 0.0
    %1149 = vmatpush1.msra.mxu0 0.0
    %1150 = vmatprep.subr.mxu0 0.0
    %1151 = vmatpush1.msra.mxu0 0.0
    %1152 = vmatprep.subr.mxu0 0.0
    %1153 = vmatpush1.msra.mxu0 0.0
    %1154 = vmatprep.mubr.f32.mxu0 0.0
    %1155 = vmatmul.mubr.f32.gmra.mrb[0].mxu0 %v1088
    %v1156 = vpop.f32.mrb[0].mxu0
    %v1157 = vadd.f32 0.0, %v1156
    %v1158 = vpop.f32.mrb[0].mxu0
    %1159 = vdwg.mxu0
    %v1160 = vadd.f32 %v1010, %v1084
    %v1161 = vadd.f32 %v1011, %v1157
    %v1162 = vxor.u32 %v1160, 2147483648
    %v1163 = vxor.u32 %v1161, 2147483648
    %v1164 = vmul.f32 %v1162, 1.442695
    %v1165 = vpow.pop %v1164
    %v1166 = vmul.f32 %v1163, 1.442695
    %v1167 = vpow.pop %v1166
    %v1168 = vadd.f32 %v1165, 1.0
    %v1169 = vadd.f32 %v1167, 1.0
    %v1170 = vrcp.pop %v1168
    %v1171 = vmul.f32 1.0, %v1170
    %v1172 = vrcp.pop %v1169
    %v1173 = vmul.f32 1.0, %v1172
    %v1174 = vtanh.pop %v1160
    %v1175 = vtanh.pop %v1161
    %v1176 = vld [vmem:[#allocation3] sm:$0x3]
    %v1177 = vld [vmem:[#allocation3 + $0x2] sm:$0x3]
    %1180 = vrot.lane.b32.xlu0 %v1176, 32
    %v1181 = vpop.permute.xlu0 %1180
    %1182 = vrot.lane.b32.xlu0 %v1177, 32
    %v1183 = vpop.permute.xlu0 %1182
    %v1186 = vmul.f32 %v1171, %v1181
    %v1187 = vmul.f32 %v1173, %v1183
    %1190 = vrot.lane.b32.xlu0 %v1174, 64
    %v1191 = vpop.permute.xlu0 %1190
    %1192 = vrot.lane.b32.xlu0 %v1175, 64
    %v1193 = vpop.permute.xlu0 %1192
    %v1196 = vmul.f32 %v1171, %v1191
    %v1197 = vmul.f32 %v1173, %v1193
    %1200 = vrot.lane.b32.xlu0 %v1196, 32
    %v1201 = vpop.permute.xlu0 %1200
    %1202 = vrot.lane.b32.xlu0 %v1197, 32
    %v1203 = vpop.permute.xlu0 %1202
    %v1206 = vadd.f32 %v1186, %v1201
    %v1207 = vadd.f32 %v1187, %v1203
    %v1208 = vtanh.pop %v1206
    %v1209 = vtanh.pop %v1207
    %1212 = vrot.lane.b32.xlu0 %v1208, 64
    %v1213 = vpop.permute.xlu0 %1212
    %1214 = vrot.lane.b32.xlu0 %v1209, 64
    %v1215 = vpop.permute.xlu0 %1214
    %v1218 = vmul.f32 %v1171, %v1213
    %v1219 = vmul.f32 %v1173, %v1215
    %1222 = vrot.lane.b32.xlu0 %v1218, 32
    %v1223 = vpop.permute.xlu0 %1222
    %1224 = vrot.lane.b32.xlu0 %v1219, 32
    %v1225 = vpop.permute.xlu0 %1224
    %1228 = vst.msk [vmem:[#allocation2] sm:$0x3] %vm44, %v1223
    %1229 = vst.msk [vmem:[#allocation2 + $0x2] sm:$0x3] %vm44, %v1225
    %1232 = vrot.lane.b32.xlu0 %v1206, 96
    %v1233 = vpop.permute.xlu0 %1232
    %1234 = vrot.lane.b32.xlu0 %v1207, 96
    %v1235 = vpop.permute.xlu0 %1234
    %1238 = vst.msk [vmem:[#allocation3] sm:$0x3] %vm44, %v1233
    %1239 = vst.msk [vmem:[#allocation3 + $0x2] sm:$0x3] %vm44, %v1235
    %1240 = vst.msk [vmem:[%s1007] sm:$0x3] %vm44, %v1223
    %1241 = vrot.lane.b32.xlu0 %v1219, 64
    %v1242 = vpop.permute.xlu0 %1241
    %1244 = vst.msk [vmem:[%s1002] sm:$0x3] %vm293, %v1242
    %s1245 = scalar_lea.vmem [#allocation4], 20
    %v1246 = vld [vmem:[%s1245] sm:$0x3]
    %v1247 = vld [vmem:[%s1245 + $0x2] sm:$0x3]
    %v1248 = vld [vmem:[#allocation2] sm:$0x3]
    %v1249 = vld [vmem:[#allocation2 + $0x2] sm:$0x3]
    %v1251 = vsel %vm61, %v1248, 0
    %1253 = vmatprep.subr.mxu0 0.0
    %1254 = vmatpush1.msra.mxu0 %v49
    %1255 = vmatprep.subr.mxu0 0.0
    %1256 = vmatpush1.msra.mxu0 %v50
    %1257 = vmatprep.subr.mxu0 0.0
    %1258 = vmatpush1.msra.mxu0 %v51
    %1259 = vmatprep.subr.mxu0 0.0
    %1260 = vmatpush1.msra.mxu0 %v52
    %1261 = vmatprep.subr.mxu0 0.0
    %1262 = vmatpush1.msra.mxu0 0.0
    %1263 = vmatprep.subr.mxu0 0.0
    %1264 = vmatpush1.msra.mxu0 0.0
    %1265 = vmatprep.subr.mxu0 0.0
    %1266 = vmatpush1.msra.mxu0 0.0
    %1267 = vmatprep.subr.mxu0 0.0
    %1268 = vmatpush1.msra.mxu0 0.0
    %1269 = vmatprep.subr.mxu0 0.0
    %1270 = vmatpush1.msra.mxu0 0.0
    %1271 = vmatprep.subr.mxu0 0.0
    %1272 = vmatpush1.msra.mxu0 0.0
    %1273 = vmatprep.subr.mxu0 0.0
    %1274 = vmatpush1.msra.mxu0 0.0
    %1275 = vmatprep.subr.mxu0 0.0
    %1276 = vmatpush1.msra.mxu0 0.0
    %1277 = vmatprep.subr.mxu0 0.0
    %1278 = vmatpush1.msra.mxu0 0.0
    %1279 = vmatprep.subr.mxu0 0.0
    %1280 = vmatpush1.msra.mxu0 0.0
    %1281 = vmatprep.subr.mxu0 0.0
    %1282 = vmatpush1.msra.mxu0 0.0
    %1283 = vmatprep.subr.mxu0 0.0
    %1284 = vmatpush1.msra.mxu0 0.0
    %1285 = vmatprep.subr.mxu0 0.0
    %1286 = vmatpush1.msra.mxu0 0.0
    %1287 = vmatprep.subr.mxu0 0.0
    %1288 = vmatpush1.msra.mxu0 0.0
    %1289 = vmatprep.subr.mxu0 0.0
    %1290 = vmatpush1.msra.mxu0 0.0
    %1291 = vmatprep.subr.mxu0 0.0
    %1292 = vmatpush1.msra.mxu0 0.0
    %1293 = vmatprep.subr.mxu0 0.0
    %1294 = vmatpush1.msra.mxu0 0.0
    %1295 = vmatprep.subr.mxu0 0.0
    %1296 = vmatpush1.msra.mxu0 0.0
    %1297 = vmatprep.subr.mxu0 0.0
    %1298 = vmatpush1.msra.mxu0 0.0
    %1299 = vmatprep.subr.mxu0 0.0
    %1300 = vmatpush1.msra.mxu0 0.0
    %1301 = vmatprep.subr.mxu0 0.0
    %1302 = vmatpush1.msra.mxu0 0.0
    %1303 = vmatprep.subr.mxu0 0.0
    %1304 = vmatpush1.msra.mxu0 0.0
    %1305 = vmatprep.subr.mxu0 0.0
    %1306 = vmatpush1.msra.mxu0 0.0
    %1307 = vmatprep.subr.mxu0 0.0
    %1308 = vmatpush1.msra.mxu0 0.0
    %1309 = vmatprep.subr.mxu0 0.0
    %1310 = vmatpush1.msra.mxu0 0.0
    %1311 = vmatprep.subr.mxu0 0.0
    %1312 = vmatpush1.msra.mxu0 0.0
    %1313 = vmatprep.subr.mxu0 0.0
    %1314 = vmatpush1.msra.mxu0 0.0
    %1315 = vmatprep.subr.mxu0 0.0
    %1316 = vmatpush1.msra.mxu0 0.0
    %1317 = vmatprep.mubr.f32.mxu0 0.0
    %1318 = vmatmul.mubr.f32.gmra.mrb[0].mxu0 %v1251
    %v1319 = vpop.f32.mrb[0].mxu0
    %v1320 = vadd.f32 0.0, %v1319
    %v1321 = vpop.f32.mrb[0].mxu0
    %1322 = vdwg.mxu0
    %v1324 = vsel %vm61, %v1249, 0
    %1326 = vmatprep.subr.mxu0 0.0
    %1327 = vmatpush1.msra.mxu0 %v53
    %1328 = vmatprep.subr.mxu0 0.0
    %1329 = vmatpush1.msra.mxu0 %v54
    %1330 = vmatprep.subr.mxu0 0.0
    %1331 = vmatpush1.msra.mxu0 %v55
    %1332 = vmatprep.subr.mxu0 0.0
    %1333 = vmatpush1.msra.mxu0 %v56
    %1334 = vmatprep.subr.mxu0 0.0
    %1335 = vmatpush1.msra.mxu0 0.0
    %1336 = vmatprep.subr.mxu0 0.0
    %1337 = vmatpush1.msra.mxu0 0.0
    %1338 = vmatprep.subr.mxu0 0.0
    %1339 = vmatpush1.msra.mxu0 0.0
    %1340 = vmatprep.subr.mxu0 0.0
    %1341 = vmatpush1.msra.mxu0 0.0
    %1342 = vmatprep.subr.mxu0 0.0
    %1343 = vmatpush1.msra.mxu0 0.0
    %1344 = vmatprep.subr.mxu0 0.0
    %1345 = vmatpush1.msra.mxu0 0.0
    %1346 = vmatprep.subr.mxu0 0.0
    %1347 = vmatpush1.msra.mxu0 0.0
    %1348 = vmatprep.subr.mxu0 0.0
    %1349 = vmatpush1.msra.mxu0 0.0
    %1350 = vmatprep.subr.mxu0 0.0
    %1351 = vmatpush1.msra.mxu0 0.0
    %1352 = vmatprep.subr.mxu0 0.0
    %1353 = vmatpush1.msra.mxu0 0.0
    %1354 = vmatprep.subr.mxu0 0.0
    %1355 = vmatpush1.msra.mxu0 0.0
    %1356 = vmatprep.subr.mxu0 0.0
    %1357 = vmatpush1.msra.mxu0 0.0
    %1358 = vmatprep.subr.mxu0 0.0
    %1359 = vmatpush1.msra.mxu0 0.0
    %1360 = vmatprep.subr.mxu0 0.0
    %1361 = vmatpush1.msra.mxu0 0.0
    %1362 = vmatprep.subr.mxu0 0.0
    %1363 = vmatpush1.msra.mxu0 0.0
    %1364 = vmatprep.subr.mxu0 0.0
    %1365 = vmatpush1.msra.mxu0 0.0
    %1366 = vmatprep.subr.mxu0 0.0
    %1367 = vmatpush1.msra.mxu0 0.0
    %1368 = vmatprep.subr.mxu0 0.0
    %1369 = vmatpush1.msra.mxu0 0.0
    %1370 = vmatprep.subr.mxu0 0.0
    %1371 = vmatpush1.msra.mxu0 0.0
    %1372 = vmatprep.subr.mxu0 0.0
    %1373 = vmatpush1.msra.mxu0 0.0
    %1374 = vmatprep.subr.mxu0 0.0
    %1375 = vmatpush1.msra.mxu0 0.0
    %1376 = vmatprep.subr.mxu0 0.0
    %1377 = vmatpush1.msra.mxu0 0.0
    %1378 = vmatprep.subr.mxu0 0.0
    %1379 = vmatpush1.msra.mxu0 0.0
    %1380 = vmatprep.subr.mxu0 0.0
    %1381 = vmatpush1.msra.mxu0 0.0
    %1382 = vmatprep.subr.mxu0 0.0
    %1383 = vmatpush1.msra.mxu0 0.0
    %1384 = vmatprep.subr.mxu0 0.0
    %1385 = vmatpush1.msra.mxu0 0.0
    %1386 = vmatprep.subr.mxu0 0.0
    %1387 = vmatpush1.msra.mxu0 0.0
    %1388 = vmatprep.subr.mxu0 0.0
    %1389 = vmatpush1.msra.mxu0 0.0
    %1390 = vmatprep.mubr.f32.mxu0 0.0
    %1391 = vmatmul.mubr.f32.gmra.mrb[0].mxu0 %v1324
    %v1392 = vpop.f32.mrb[0].mxu0
    %v1393 = vadd.f32 0.0, %v1392
    %v1394 = vpop.f32.mrb[0].mxu0
    %1395 = vdwg.mxu0
    %v1396 = vadd.f32 %v1246, %v1320
    %v1397 = vadd.f32 %v1247, %v1393
    %v1398 = vxor.u32 %v1396, 2147483648
    %v1399 = vxor.u32 %v1397, 2147483648
    %v1400 = vmul.f32 %v1398, 1.442695
    %v1401 = vpow.pop %v1400
    %v1402 = vmul.f32 %v1399, 1.442695
    %v1403 = vpow.pop %v1402
    %v1404 = vadd.f32 %v1401, 1.0
    %v1405 = vadd.f32 %v1403, 1.0
    %v1406 = vrcp.pop %v1404
    %v1407 = vmul.f32 1.0, %v1406
    %v1408 = vrcp.pop %v1405
    %v1409 = vmul.f32 1.0, %v1408
    %v1410 = vtanh.pop %v1396
    %v1411 = vtanh.pop %v1397
    %v1412 = vld [vmem:[#allocation3] sm:$0x3]
    %v1413 = vld [vmem:[#allocation3 + $0x2] sm:$0x3]
    %1416 = vrot.lane.b32.xlu0 %v1412, 32
    %v1417 = vpop.permute.xlu0 %1416
    %1418 = vrot.lane.b32.xlu0 %v1413, 32
    %v1419 = vpop.permute.xlu0 %1418
    %v1422 = vmul.f32 %v1407, %v1417
    %v1423 = vmul.f32 %v1409, %v1419
    %1426 = vrot.lane.b32.xlu0 %v1410, 64
    %v1427 = vpop.permute.xlu0 %1426
    %1428 = vrot.lane.b32.xlu0 %v1411, 64
    %v1429 = vpop.permute.xlu0 %1428
    %v1432 = vmul.f32 %v1407, %v1427
    %v1433 = vmul.f32 %v1409, %v1429
    %1436 = vrot.lane.b32.xlu0 %v1432, 32
    %v1437 = vpop.permute.xlu0 %1436
    %1438 = vrot.lane.b32.xlu0 %v1433, 32
    %v1439 = vpop.permute.xlu0 %1438
    %v1442 = vadd.f32 %v1422, %v1437
    %v1443 = vadd.f32 %v1423, %v1439
    %v1444 = vtanh.pop %v1442
    %v1445 = vtanh.pop %v1443
    %1448 = vrot.lane.b32.xlu0 %v1444, 64
    %v1449 = vpop.permute.xlu0 %1448
    %1450 = vrot.lane.b32.xlu0 %v1445, 64
    %v1451 = vpop.permute.xlu0 %1450
    %v1454 = vmul.f32 %v1407, %v1449
    %v1455 = vmul.f32 %v1409, %v1451
    %1458 = vrot.lane.b32.xlu0 %v1454, 32
    %v1459 = vpop.permute.xlu0 %1458
    %1460 = vrot.lane.b32.xlu0 %v1455, 32
    %v1461 = vpop.permute.xlu0 %1460
    %1464 = vst.msk [vmem:[#allocation2] sm:$0x3] %vm44, %v1459
    %1465 = vst.msk [vmem:[#allocation2 + $0x2] sm:$0x3] %vm44, %v1461
    %1468 = vrot.lane.b32.xlu0 %v1442, 96
    %v1469 = vpop.permute.xlu0 %1468
    %1470 = vrot.lane.b32.xlu0 %v1443, 96
    %v1471 = vpop.permute.xlu0 %1470
    %1474 = vst.msk [vmem:[#allocation3] sm:$0x3] %vm44, %v1469
    %1475 = vst.msk [vmem:[#allocation3 + $0x2] sm:$0x3] %vm44, %v1471
    %1476 = vst.msk [vmem:[%s769] sm:$0x3] %vm44, %v1459
    %1477 = vrot.lane.b32.xlu0 %v1455, 64
    %v1478 = vpop.permute.xlu0 %1477
    %1480 = vst.msk [vmem:[%s764] sm:$0x3] %vm293, %v1478
    %s1481 = scalar_lea.vmem [#allocation4], 24
    %v1482 = vld [vmem:[%s1481] sm:$0x3]
    %v1483 = vld [vmem:[%s1481 + $0x2] sm:$0x3]
    %v1484 = vld [vmem:[#allocation2] sm:$0x3]
    %v1485 = vld [vmem:[#allocation2 + $0x2] sm:$0x3]
    %v1487 = vsel %vm61, %v1484, 0
    %1489 = vmatprep.subr.mxu0 0.0
    %1490 = vmatpush1.msra.mxu0 %v49
    %1491 = vmatprep.subr.mxu0 0.0
    %1492 = vmatpush1.msra.mxu0 %v50
    %1493 = vmatprep.subr.mxu0 0.0
    %1494 = vmatpush1.msra.mxu0 %v51
    %1495 = vmatprep.subr.mxu0 0.0
    %1496 = vmatpush1.msra.mxu0 %v52
    %1497 = vmatprep.subr.mxu0 0.0
    %1498 = vmatpush1.msra.mxu0 0.0
    %1499 = vmatprep.subr.mxu0 0.0
    %1500 = vmatpush1.msra.mxu0 0.0
    %1501 = vmatprep.subr.mxu0 0.0
    %1502 = vmatpush1.msra.mxu0 0.0
    %1503 = vmatprep.subr.mxu0 0.0
    %1504 = vmatpush1.msra.mxu0 0.0
    %1505 = vmatprep.subr.mxu0 0.0
    %1506 = vmatpush1.msra.mxu0 0.0
    %1507 = vmatprep.subr.mxu0 0.0
    %1508 = vmatpush1.msra.mxu0 0.0
    %1509 = vmatprep.subr.mxu0 0.0
    %1510 = vmatpush1.msra.mxu0 0.0
    %1511 = vmatprep.subr.mxu0 0.0
    %1512 = vmatpush1.msra.mxu0 0.0
    %1513 = vmatprep.subr.mxu0 0.0
    %1514 = vmatpush1.msra.mxu0 0.0
    %1515 = vmatprep.subr.mxu0 0.0
    %1516 = vmatpush1.msra.mxu0 0.0
    %1517 = vmatprep.subr.mxu0 0.0
    %1518 = vmatpush1.msra.mxu0 0.0
    %1519 = vmatprep.subr.mxu0 0.0
    %1520 = vmatpush1.msra.mxu0 0.0
    %1521 = vmatprep.subr.mxu0 0.0
    %1522 = vmatpush1.msra.mxu0 0.0
    %1523 = vmatprep.subr.mxu0 0.0
    %1524 = vmatpush1.msra.mxu0 0.0
    %1525 = vmatprep.subr.mxu0 0.0
    %1526 = vmatpush1.msra.mxu0 0.0
    %1527 = vmatprep.subr.mxu0 0.0
    %1528 = vmatpush1.msra.mxu0 0.0
    %1529 = vmatprep.subr.mxu0 0.0
    %1530 = vmatpush1.msra.mxu0 0.0
    %1531 = vmatprep.subr.mxu0 0.0
    %1532 = vmatpush1.msra.mxu0 0.0
    %1533 = vmatprep.subr.mxu0 0.0
    %1534 = vmatpush1.msra.mxu0 0.0
    %1535 = vmatprep.subr.mxu0 0.0
    %1536 = vmatpush1.msra.mxu0 0.0
    %1537 = vmatprep.subr.mxu0 0.0
    %1538 = vmatpush1.msra.mxu0 0.0
    %1539 = vmatprep.subr.mxu0 0.0
    %1540 = vmatpush1.msra.mxu0 0.0
    %1541 = vmatprep.subr.mxu0 0.0
    %1542 = vmatpush1.msra.mxu0 0.0
    %1543 = vmatprep.subr.mxu0 0.0
    %1544 = vmatpush1.msra.mxu0 0.0
    %1545 = vmatprep.subr.mxu0 0.0
    %1546 = vmatpush1.msra.mxu0 0.0
    %1547 = vmatprep.subr.mxu0 0.0
    %1548 = vmatpush1.msra.mxu0 0.0
    %1549 = vmatprep.subr.mxu0 0.0
    %1550 = vmatpush1.msra.mxu0 0.0
    %1551 = vmatprep.subr.mxu0 0.0
    %1552 = vmatpush1.msra.mxu0 0.0
    %1553 = vmatprep.mubr.f32.mxu0 0.0
    %1554 = vmatmul.mubr.f32.gmra.mrb[0].mxu0 %v1487
    %v1555 = vpop.f32.mrb[0].mxu0
    %v1556 = vadd.f32 0.0, %v1555
    %v1557 = vpop.f32.mrb[0].mxu0
    %1558 = vdwg.mxu0
    %v1560 = vsel %vm61, %v1485, 0
    %1562 = vmatprep.subr.mxu0 0.0
    %1563 = vmatpush1.msra.mxu0 %v53
    %1564 = vmatprep.subr.mxu0 0.0
    %1565 = vmatpush1.msra.mxu0 %v54
    %1566 = vmatprep.subr.mxu0 0.0
    %1567 = vmatpush1.msra.mxu0 %v55
    %1568 = vmatprep.subr.mxu0 0.0
    %1569 = vmatpush1.msra.mxu0 %v56
    %1570 = vmatprep.subr.mxu0 0.0
    %1571 = vmatpush1.msra.mxu0 0.0
    %1572 = vmatprep.subr.mxu0 0.0
    %1573 = vmatpush1.msra.mxu0 0.0
    %1574 = vmatprep.subr.mxu0 0.0
    %1575 = vmatpush1.msra.mxu0 0.0
    %1576 = vmatprep.subr.mxu0 0.0
    %1577 = vmatpush1.msra.mxu0 0.0
    %1578 = vmatprep.subr.mxu0 0.0
    %1579 = vmatpush1.msra.mxu0 0.0
    %1580 = vmatprep.subr.mxu0 0.0
    %1581 = vmatpush1.msra.mxu0 0.0
    %1582 = vmatprep.subr.mxu0 0.0
    %1583 = vmatpush1.msra.mxu0 0.0
    %1584 = vmatprep.subr.mxu0 0.0
    %1585 = vmatpush1.msra.mxu0 0.0
    %1586 = vmatprep.subr.mxu0 0.0
    %1587 = vmatpush1.msra.mxu0 0.0
    %1588 = vmatprep.subr.mxu0 0.0
    %1589 = vmatpush1.msra.mxu0 0.0
    %1590 = vmatprep.subr.mxu0 0.0
    %1591 = vmatpush1.msra.mxu0 0.0
    %1592 = vmatprep.subr.mxu0 0.0
    %1593 = vmatpush1.msra.mxu0 0.0
    %1594 = vmatprep.subr.mxu0 0.0
    %1595 = vmatpush1.msra.mxu0 0.0
    %1596 = vmatprep.subr.mxu0 0.0
    %1597 = vmatpush1.msra.mxu0 0.0
    %1598 = vmatprep.subr.mxu0 0.0
    %1599 = vmatpush1.msra.mxu0 0.0
    %1600 = vmatprep.subr.mxu0 0.0
    %1601 = vmatpush1.msra.mxu0 0.0
    %1602 = vmatprep.subr.mxu0 0.0
    %1603 = vmatpush1.msra.mxu0 0.0
    %1604 = vmatprep.subr.mxu0 0.0
    %1605 = vmatpush1.msra.mxu0 0.0
    %1606 = vmatprep.subr.mxu0 0.0
    %1607 = vmatpush1.msra.mxu0 0.0
    %1608 = vmatprep.subr.mxu0 0.0
    %1609 = vmatpush1.msra.mxu0 0.0
    %1610 = vmatprep.subr.mxu0 0.0
    %1611 = vmatpush1.msra.mxu0 0.0
    %1612 = vmatprep.subr.mxu0 0.0
    %1613 = vmatpush1.msra.mxu0 0.0
    %1614 = vmatprep.subr.mxu0 0.0
    %1615 = vmatpush1.msra.mxu0 0.0
    %1616 = vmatprep.subr.mxu0 0.0
    %1617 = vmatpush1.msra.mxu0 0.0
    %1618 = vmatprep.subr.mxu0 0.0
    %1619 = vmatpush1.msra.mxu0 0.0
    %1620 = vmatprep.subr.mxu0 0.0
    %1621 = vmatpush1.msra.mxu0 0.0
    %1622 = vmatprep.subr.mxu0 0.0
    %1623 = vmatpush1.msra.mxu0 0.0
    %1624 = vmatprep.subr.mxu0 0.0
    %1625 = vmatpush1.msra.mxu0 0.0
    %1626 = vmatprep.mubr.f32.mxu0 0.0
    %1627 = vmatmul.mubr.f32.gmra.mrb[0].mxu0 %v1560
    %v1628 = vpop.f32.mrb[0].mxu0
    %v1629 = vadd.f32 0.0, %v1628
    %v1630 = vpop.f32.mrb[0].mxu0
    %1631 = vdwg.mxu0
    %v1632 = vadd.f32 %v1482, %v1556
    %v1633 = vadd.f32 %v1483, %v1629
    %v1634 = vxor.u32 %v1632, 2147483648
    %v1635 = vxor.u32 %v1633, 2147483648
    %v1636 = vmul.f32 %v1634, 1.442695
    %v1637 = vpow.pop %v1636
    %v1638 = vmul.f32 %v1635, 1.442695
    %v1639 = vpow.pop %v1638
    %v1640 = vadd.f32 %v1637, 1.0
    %v1641 = vadd.f32 %v1639, 1.0
    %v1642 = vrcp.pop %v1640
    %v1643 = vmul.f32 1.0, %v1642
    %v1644 = vrcp.pop %v1641
    %v1645 = vmul.f32 1.0, %v1644
    %v1646 = vtanh.pop %v1632
    %v1647 = vtanh.pop %v1633
    %v1648 = vld [vmem:[#allocation3] sm:$0x3]
    %v1649 = vld [vmem:[#allocation3 + $0x2] sm:$0x3]
    %1652 = vrot.lane.b32.xlu0 %v1648, 32
    %v1653 = vpop.permute.xlu0 %1652
    %1654 = vrot.lane.b32.xlu0 %v1649, 32
    %v1655 = vpop.permute.xlu0 %1654
    %v1658 = vmul.f32 %v1643, %v1653
    %v1659 = vmul.f32 %v1645, %v1655
    %1662 = vrot.lane.b32.xlu0 %v1646, 64
    %v1663 = vpop.permute.xlu0 %1662
    %1664 = vrot.lane.b32.xlu0 %v1647, 64
    %v1665 = vpop.permute.xlu0 %1664
    %v1668 = vmul.f32 %v1643, %v1663
    %v1669 = vmul.f32 %v1645, %v1665
    %1672 = vrot.lane.b32.xlu0 %v1668, 32
    %v1673 = vpop.permute.xlu0 %1672
    %1674 = vrot.lane.b32.xlu0 %v1669, 32
    %v1675 = vpop.permute.xlu0 %1674
    %v1678 = vadd.f32 %v1658, %v1673
    %v1679 = vadd.f32 %v1659, %v1675
    %v1680 = vtanh.pop %v1678
    %v1681 = vtanh.pop %v1679
    %1684 = vrot.lane.b32.xlu0 %v1680, 64
    %v1685 = vpop.permute.xlu0 %1684
    %1686 = vrot.lane.b32.xlu0 %v1681, 64
    %v1687 = vpop.permute.xlu0 %1686
    %v1690 = vmul.f32 %v1643, %v1685
    %v1691 = vmul.f32 %v1645, %v1687
    %1694 = vrot.lane.b32.xlu0 %v1690, 32
    %v1695 = vpop.permute.xlu0 %1694
    %1696 = vrot.lane.b32.xlu0 %v1691, 32
    %v1697 = vpop.permute.xlu0 %1696
    %1700 = vst.msk [vmem:[#allocation2] sm:$0x3] %vm44, %v1695
    %1701 = vst.msk [vmem:[#allocation2 + $0x2] sm:$0x3] %vm44, %v1697
    %1704 = vrot.lane.b32.xlu0 %v1678, 96
    %v1705 = vpop.permute.xlu0 %1704
    %1706 = vrot.lane.b32.xlu0 %v1679, 96
    %v1707 = vpop.permute.xlu0 %1706
    %1710 = vst.msk [vmem:[#allocation3] sm:$0x3] %vm44, %v1705
    %1711 = vst.msk [vmem:[#allocation3 + $0x2] sm:$0x3] %vm44, %v1707
    %1712 = vst.msk [vmem:[%s531] sm:$0x3] %vm44, %v1695
    %1713 = vrot.lane.b32.xlu0 %v1691, 64
    %v1714 = vpop.permute.xlu0 %1713
    %1716 = vst.msk [vmem:[%s526] sm:$0x3] %vm293, %v1714
    %s1717 = scalar_lea.vmem [#allocation4], 28
    %v1718 = vld [vmem:[%s1717] sm:$0x3]
    %v1719 = vld [vmem:[%s1717 + $0x2] sm:$0x3]
    %v1720 = vld [vmem:[#allocation2] sm:$0x3]
    %v1721 = vld [vmem:[#allocation2 + $0x2] sm:$0x3]
    %v1723 = vsel %vm61, %v1720, 0
    %1725 = vmatprep.subr.mxu0 0.0
    %1726 = vmatpush1.msra.mxu0 %v49
    %1727 = vmatprep.subr.mxu0 0.0
    %1728 = vmatpush1.msra.mxu0 %v50
    %1729 = vmatprep.subr.mxu0 0.0
    %1730 = vmatpush1.msra.mxu0 %v51
    %1731 = vmatprep.subr.mxu0 0.0
    %1732 = vmatpush1.msra.mxu0 %v52
    %1733 = vmatprep.subr.mxu0 0.0
    %1734 = vmatpush1.msra.mxu0 0.0
    %1735 = vmatprep.subr.mxu0 0.0
    %1736 = vmatpush1.msra.mxu0 0.0
    %1737 = vmatprep.subr.mxu0 0.0
    %1738 = vmatpush1.msra.mxu0 0.0
    %1739 = vmatprep.subr.mxu0 0.0
    %1740 = vmatpush1.msra.mxu0 0.0
    %1741 = vmatprep.subr.mxu0 0.0
    %1742 = vmatpush1.msra.mxu0 0.0
    %1743 = vmatprep.subr.mxu0 0.0
    %1744 = vmatpush1.msra.mxu0 0.0
    %1745 = vmatprep.subr.mxu0 0.0
    %1746 = vmatpush1.msra.mxu0 0.0
    %1747 = vmatprep.subr.mxu0 0.0
    %1748 = vmatpush1.msra.mxu0 0.0
    %1749 = vmatprep.subr.mxu0 0.0
    %1750 = vmatpush1.msra.mxu0 0.0
    %1751 = vmatprep.subr.mxu0 0.0
    %1752 = vmatpush1.msra.mxu0 0.0
    %1753 = vmatprep.subr.mxu0 0.0
    %1754 = vmatpush1.msra.mxu0 0.0
    %1755 = vmatprep.subr.mxu0 0.0
    %1756 = vmatpush1.msra.mxu0 0.0
    %1757 = vmatprep.subr.mxu0 0.0
    %1758 = vmatpush1.msra.mxu0 0.0
    %1759 = vmatprep.subr.mxu0 0.0
    %1760 = vmatpush1.msra.mxu0 0.0
    %1761 = vmatprep.subr.mxu0 0.0
    %1762 = vmatpush1.msra.mxu0 0.0
    %1763 = vmatprep.subr.mxu0 0.0
    %1764 = vmatpush1.msra.mxu0 0.0
    %1765 = vmatprep.subr.mxu0 0.0
    %1766 = vmatpush1.msra.mxu0 0.0
    %1767 = vmatprep.subr.mxu0 0.0
    %1768 = vmatpush1.msra.mxu0 0.0
    %1769 = vmatprep.subr.mxu0 0.0
    %1770 = vmatpush1.msra.mxu0 0.0
    %1771 = vmatprep.subr.mxu0 0.0
    %1772 = vmatpush1.msra.mxu0 0.0
    %1773 = vmatprep.subr.mxu0 0.0
    %1774 = vmatpush1.msra.mxu0 0.0
    %1775 = vmatprep.subr.mxu0 0.0
    %1776 = vmatpush1.msra.mxu0 0.0
    %1777 = vmatprep.subr.mxu0 0.0
    %1778 = vmatpush1.msra.mxu0 0.0
    %1779 = vmatprep.subr.mxu0 0.0
    %1780 = vmatpush1.msra.mxu0 0.0
    %1781 = vmatprep.subr.mxu0 0.0
    %1782 = vmatpush1.msra.mxu0 0.0
    %1783 = vmatprep.subr.mxu0 0.0
    %1784 = vmatpush1.msra.mxu0 0.0
    %1785 = vmatprep.subr.mxu0 0.0
    %1786 = vmatpush1.msra.mxu0 0.0
    %1787 = vmatprep.subr.mxu0 0.0
    %1788 = vmatpush1.msra.mxu0 0.0
    %1789 = vmatprep.mubr.f32.mxu0 0.0
    %1790 = vmatmul.mubr.f32.gmra.mrb[0].mxu0 %v1723
    %v1791 = vpop.f32.mrb[0].mxu0
    %v1792 = vadd.f32 0.0, %v1791
    %v1793 = vpop.f32.mrb[0].mxu0
    %1794 = vdwg.mxu0
    %v1796 = vsel %vm61, %v1721, 0
    %1798 = vmatprep.subr.mxu0 0.0
    %1799 = vmatpush1.msra.mxu0 %v53
    %1800 = vmatprep.subr.mxu0 0.0
    %1801 = vmatpush1.msra.mxu0 %v54
    %1802 = vmatprep.subr.mxu0 0.0
    %1803 = vmatpush1.msra.mxu0 %v55
    %1804 = vmatprep.subr.mxu0 0.0
    %1805 = vmatpush1.msra.mxu0 %v56
    %1806 = vmatprep.subr.mxu0 0.0
    %1807 = vmatpush1.msra.mxu0 0.0
    %1808 = vmatprep.subr.mxu0 0.0
    %1809 = vmatpush1.msra.mxu0 0.0
    %1810 = vmatprep.subr.mxu0 0.0
    %1811 = vmatpush1.msra.mxu0 0.0
    %1812 = vmatprep.subr.mxu0 0.0
    %1813 = vmatpush1.msra.mxu0 0.0
    %1814 = vmatprep.subr.mxu0 0.0
    %1815 = vmatpush1.msra.mxu0 0.0
    %1816 = vmatprep.subr.mxu0 0.0
    %1817 = vmatpush1.msra.mxu0 0.0
    %1818 = vmatprep.subr.mxu0 0.0
    %1819 = vmatpush1.msra.mxu0 0.0
    %1820 = vmatprep.subr.mxu0 0.0
    %1821 = vmatpush1.msra.mxu0 0.0
    %1822 = vmatprep.subr.mxu0 0.0
    %1823 = vmatpush1.msra.mxu0 0.0
    %1824 = vmatprep.subr.mxu0 0.0
    %1825 = vmatpush1.msra.mxu0 0.0
    %1826 = vmatprep.subr.mxu0 0.0
    %1827 = vmatpush1.msra.mxu0 0.0
    %1828 = vmatprep.subr.mxu0 0.0
    %1829 = vmatpush1.msra.mxu0 0.0
    %1830 = vmatprep.subr.mxu0 0.0
    %1831 = vmatpush1.msra.mxu0 0.0
    %1832 = vmatprep.subr.mxu0 0.0
    %1833 = vmatpush1.msra.mxu0 0.0
    %1834 = vmatprep.subr.mxu0 0.0
    %1835 = vmatpush1.msra.mxu0 0.0
    %1836 = vmatprep.subr.mxu0 0.0
    %1837 = vmatpush1.msra.mxu0 0.0
    %1838 = vmatprep.subr.mxu0 0.0
    %1839 = vmatpush1.msra.mxu0 0.0
    %1840 = vmatprep.subr.mxu0 0.0
    %1841 = vmatpush1.msra.mxu0 0.0
    %1842 = vmatprep.subr.mxu0 0.0
    %1843 = vmatpush1.msra.mxu0 0.0
    %1844 = vmatprep.subr.mxu0 0.0
    %1845 = vmatpush1.msra.mxu0 0.0
    %1846 = vmatprep.subr.mxu0 0.0
    %1847 = vmatpush1.msra.mxu0 0.0
    %1848 = vmatprep.subr.mxu0 0.0
    %1849 = vmatpush1.msra.mxu0 0.0
    %1850 = vmatprep.subr.mxu0 0.0
    %1851 = vmatpush1.msra.mxu0 0.0
    %1852 = vmatprep.subr.mxu0 0.0
    %1853 = vmatpush1.msra.mxu0 0.0
    %1854 = vmatprep.subr.mxu0 0.0
    %1855 = vmatpush1.msra.mxu0 0.0
    %1856 = vmatprep.subr.mxu0 0.0
    %1857 = vmatpush1.msra.mxu0 0.0
    %1858 = vmatprep.subr.mxu0 0.0
    %1859 = vmatpush1.msra.mxu0 0.0
    %1860 = vmatprep.subr.mxu0 0.0
    %1861 = vmatpush1.msra.mxu0 0.0
    %1862 = vmatprep.mubr.f32.mxu0 0.0
    %1863 = vmatmul.mubr.f32.gmra.mrb[0].mxu0 %v1796
    %v1864 = vpop.f32.mrb[0].mxu0
    %v1865 = vadd.f32 0.0, %v1864
    %v1866 = vpop.f32.mrb[0].mxu0
    %1867 = vdwg.mxu0
    %v1868 = vadd.f32 %v1718, %v1792
    %v1869 = vadd.f32 %v1719, %v1865
    %v1870 = vxor.u32 %v1868, 2147483648
    %v1871 = vxor.u32 %v1869, 2147483648
    %v1872 = vmul.f32 %v1870, 1.442695
    %v1873 = vpow.pop %v1872
    %v1874 = vmul.f32 %v1871, 1.442695
    %v1875 = vpow.pop %v1874
    %v1876 = vadd.f32 %v1873, 1.0
    %v1877 = vadd.f32 %v1875, 1.0
    %v1878 = vrcp.pop %v1876
    %v1879 = vmul.f32 1.0, %v1878
    %v1880 = vrcp.pop %v1877
    %v1881 = vmul.f32 1.0, %v1880
    %v1882 = vtanh.pop %v1868
    %v1883 = vtanh.pop %v1869
    %v1884 = vld [vmem:[#allocation3] sm:$0x3]
    %v1885 = vld [vmem:[#allocation3 + $0x2] sm:$0x3]
    %1888 = vrot.lane.b32.xlu0 %v1884, 32
    %v1889 = vpop.permute.xlu0 %1888
    %1890 = vrot.lane.b32.xlu0 %v1885, 32
    %v1891 = vpop.permute.xlu0 %1890
    %v1894 = vmul.f32 %v1879, %v1889
    %v1895 = vmul.f32 %v1881, %v1891
    %1898 = vrot.lane.b32.xlu0 %v1882, 64
    %v1899 = vpop.permute.xlu0 %1898
    %1900 = vrot.lane.b32.xlu0 %v1883, 64
    %v1901 = vpop.permute.xlu0 %1900
    %v1904 = vmul.f32 %v1879, %v1899
    %v1905 = vmul.f32 %v1881, %v1901
    %1908 = vrot.lane.b32.xlu0 %v1904, 32
    %v1909 = vpop.permute.xlu0 %1908
    %1910 = vrot.lane.b32.xlu0 %v1905, 32
    %v1911 = vpop.permute.xlu0 %1910
    %v1914 = vadd.f32 %v1894, %v1909
    %v1915 = vadd.f32 %v1895, %v1911
    %v1916 = vtanh.pop %v1914
    %v1917 = vtanh.pop %v1915
    %1920 = vrot.lane.b32.xlu0 %v1916, 64
    %v1921 = vpop.permute.xlu0 %1920
    %1922 = vrot.lane.b32.xlu0 %v1917, 64
    %v1923 = vpop.permute.xlu0 %1922
    %v1926 = vmul.f32 %v1879, %v1921
    %v1927 = vmul.f32 %v1881, %v1923
    %1930 = vrot.lane.b32.xlu0 %v1926, 32
    %v1931 = vpop.permute.xlu0 %1930
    %1932 = vrot.lane.b32.xlu0 %v1927, 32
    %v1933 = vpop.permute.xlu0 %1932
    %1936 = vst.msk [vmem:[#allocation2] sm:$0x3] %vm44, %v1931
    %1937 = vst.msk [vmem:[#allocation2 + $0x2] sm:$0x3] %vm44, %v1933
    %1940 = vrot.lane.b32.xlu0 %v1914, 96
    %v1941 = vpop.permute.xlu0 %1940
    %1942 = vrot.lane.b32.xlu0 %v1915, 96
    %v1943 = vpop.permute.xlu0 %1942
    %1946 = vst.msk [vmem:[#allocation3] sm:$0x3] %vm44, %v1941
    %1947 = vst.msk [vmem:[#allocation3 + $0x2] sm:$0x3] %vm44, %v1943
    %1948 = vst.msk [vmem:[%s292] sm:$0x3] %vm44, %v1931
    %1949 = vrot.lane.b32.xlu0 %v1927, 64
    %v1950 = vpop.permute.xlu0 %1949
    %1952 = vst.msk [vmem:[#allocation9] sm:$0x3] %vm293, %v1950
    %v1953 = vld [vmem:[#allocation2] sm:$0x3]
    %v1954 = vld [vmem:[#allocation2 + $0x2] sm:$0x3]
    %1955 = vst.msk [vmem:[#allocation10] sm:$0x3] %vm44, %v1953
    %1956 = vst.msk [vmem:[#allocation10 + $0x2] sm:$0x3] %vm44, %v1954
    %v1957 = vld [vmem:[#allocation3] sm:$0x3]
    %v1958 = vld [vmem:[#allocation3 + $0x2] sm:$0x3]
    %1959 = vst.msk [vmem:[#allocation12] sm:$0x3] %vm44, %v1957
    %1960 = vst.msk [vmem:[#allocation12 + $0x2] sm:$0x3] %vm44, %v1958
    // Predicated region
    $region18: #{tpu_custom_call.1} parent=1 // pred_check
      _
    $region19: #{tpu_custom_call.1} parent=1 // pred_check_branch
      %1962 = sbr.rel (0) target = $region21
    $region20: #{tpu_custom_call.1} parent=1 // pred_region
      %s1964 = ssub.s32 256, 256
      %1965 = vsyncadd [#allocation6], %s1964
      %s1966 = sshll.u32 [#allocation9], 4
      %s1967 = int_to_ptr.vmem [resolvable:$true] %s1966
      %1972 = dma.vmem_to_hbm [thread:$0]  %s1967, 256, %s2, [#allocation6], 32, 32, 2
    $region21: #{tpu_custom_call.1} parent=1 // pred_fallthru
      _
    // Predicated region
    $region22: #{tpu_custom_call.1} parent=1 // pred_check
      _
    $region23: #{tpu_custom_call.1} parent=1 // pred_check_branch
      %1974 = sbr.rel (0) target = $region25
    $region24: #{tpu_custom_call.1} parent=1 // pred_region
      %s1976 = ssub.s32 64, 64
      %1977 = vsyncadd [#allocation11], %s1976
      %s1978 = sshll.u32 [#allocation10], 4
      %s1979 = int_to_ptr.vmem [resolvable:$true] %s1978
      %1984 = dma.vmem_to_hbm [thread:$0]  %s1979, 64, %s3, [#allocation11], 32, 32, 2
    $region25: #{tpu_custom_call.1} parent=1 // pred_fallthru
      _
    // Predicated region
    $region26: #{tpu_custom_call.1} parent=1 // pred_check
      _
    $region27: #{tpu_custom_call.1} parent=1 // pred_check_branch
      %1986 = sbr.rel (0) target = $region29
    $region28: #{tpu_custom_call.1} parent=1 // pred_region
      %s1988 = ssub.s32 64, 64
      %1989 = vsyncadd [#allocation11], %s1988
      %s1990 = sshll.u32 [#allocation12], 4
      %s1991 = int_to_ptr.vmem [resolvable:$true] %s1990
      %1996 = dma.vmem_to_hbm [thread:$0]  %s1991, 64, %s4, [#allocation11], 32, 32, 2
    $region29: #{tpu_custom_call.1} parent=1 // pred_fallthru
      _
    // Predicated region
    $region30: #{tpu_custom_call.1} parent=1 // pred_check
      _
    $region31: #{tpu_custom_call.1} parent=1 // pred_check_branch
      %1998 = sbr.rel (0) target = $region33
    $region32: #{tpu_custom_call.1} parent=1 // pred_region
      %1999 = dma.done [#allocation6], 256
    $region33: #{tpu_custom_call.1} parent=1 // pred_fallthru
      _
    // Predicated region
    $region34: #{tpu_custom_call.1} parent=1 // pred_check
      _
    $region35: #{tpu_custom_call.1} parent=1 // pred_check_branch
      %2001 = sbr.rel (0) target = $region37
    $region36: #{tpu_custom_call.1} parent=1 // pred_region
      %2002 = dma.done [#allocation11], 64
    $region37: #{tpu_custom_call.1} parent=1 // pred_fallthru
      _
    // Predicated region
    $region38: #{tpu_custom_call.1} parent=1 // pred_check
      _
    $region39: #{tpu_custom_call.1} parent=1 // pred_check_branch
      %2004 = sbr.rel (0) target = $region41
    $region40: #{tpu_custom_call.1} parent=1 // pred_region
      %2005 = dma.done [#allocation11], 64
    $region41: #{tpu_custom_call.1} parent=1 // pred_fallthru
      _
    %2006 = vsyncpa [#allocation5], 1
    %2007 = vsyncpa [#allocation8], 1
    %2008 = vsyncpa [#allocation6], 1
    %2009 = vsyncpa [#allocation11], 1

</llo_original>
